<compile_context>
chip_gen: v7x
topology: tpu7x:2x2x1
jax: 0.10.0
libtpu: 0.0.40
codegen_flags: <defaults>
</compile_context>

<pallas_src>
import functools

import jax
import jax.numpy as jnp
from jax.experimental import pallas as pl
from jax.experimental.pallas import tpu as pltpu

INPUT_DIM = 4
OUTPUT_DIM = 4
HID_DIM = 32


# -----------------------------------------------------------------------------
# Kernel
# -----------------------------------------------------------------------------
def _seq2seq_kernel(force_ref,     # SMEM (S,) int32 teacher-force flags
                    act_ref,       # VMEM (B*S, I+O) f32  [src | trg] flattened
                    w_slab_ref,    # VMEM (H, 512)  [We_hh@0 | Wd_hh@128 | Wo@256 | Wo@Wd_ih@384]
                    p_slab_ref,    # VMEM (16, 256) rows0:8 blockdiag[We_ih;Wd_ih], row8 [be|bd], row9 [bo|fb_bias]
                    out_ref):      # VMEM (B, S, O) f32
    B, S, O = out_ref.shape
    H = w_slab_ref.shape[0]
    f32 = jnp.float32

    # ---- hoisted, lane/sublane-aligned parameter slices (loaded once) --------
    w_enc = w_slab_ref[:, 0:H]              # (H, H)    encoder recurrence We_hh
    w_dec = w_slab_ref[:, 128:512]          # (H, 384)  [Wd_hh | Wo | Wo@Wd_ih] at 0/128/256
    w_in = p_slab_ref[0:8, :]               # (8, 256)  blockdiag(We_ih, Wd_ih) at lanes 0 / 128
    b_in = p_slab_ref[8:9, :]               # (1, 256)  [be @ 0:H | bd @ 128:128+H]
    bo_b = jnp.broadcast_to(p_slab_ref[9:10, 0:O], (B, O))            # output bias
    fb_b = jnp.broadcast_to(p_slab_ref[9:10, 128:128 + H], (B, H))    # bo@Wd_ih + bd

    # ---- off-chain batched input projections (ONE MXU dot) -------------------
    #   proj[:, 0:H]       = src_t @ We_ih + be
    #   proj[:, 128:128+H] = trg_t @ Wd_ih + bd
    proj = jnp.dot(act_ref[...], w_in, preferred_element_type=f32) + b_in   # (B*S, 256)
    src_proj = proj[:, 0:H].reshape(B, S, H)
    trg_proj = proj[:, 128:128 + H].reshape(B, S, H)

    # ---------------- encoder (serial, fully unrolled) ------------------------
    # h_{-1} == 0  ->  first step needs no h @ We_hh matmul at all.
    h = jnp.tanh(src_proj[:, 0, :])
    for t in range(1, S):
        h = jnp.tanh(src_proj[:, t, :]
                     + jnp.dot(h, w_enc, preferred_element_type=f32))

    # ---------------- decoder --------------------------------------------------
    # outputs[:, 0, :] stays zero (matches torch.zeros init); rows 1..S-1 are
    # fully overwritten below.
    out_ref[:, 0, :] = jnp.zeros((B, O), dtype=out_ref.dtype)

    # x = trg[:, 0, :] in projected form (bd already folded into trg_proj).
    x_proj = trg_proj[:, 0, :]
    # Encoder hidden hand-off: h_enc @ Wd_hh is the first vreg of the fused dot.
    hh_proj = jnp.dot(h, w_dec, preferred_element_type=f32)[:, 0:H]

    for t in range(1, S):                   # fully unrolled (S is static)
        h = jnp.tanh(x_proj + hh_proj)      # bd folded into x_proj already
        # ONE fused MXU dot per step; segments are 128-lane aligned so each
        # extract below is a free vreg-offset-0 slice (no lane rotates).
        big = jnp.dot(h, w_dec, preferred_element_type=f32)     # (B, 384)
        hh_proj = big[:, 0:H]                                   # h @ Wd_hh
        out_ref[:, t, :] = big[:, 128:128 + O] + bo_b           # h @ Wo + bo
        if t < S - 1:
            # feedback: out @ Wd_ih + bd  ==  h@(Wo@Wd_ih) + (bo@Wd_ih + bd)
            fb_proj = big[:, 256:256 + H] + fb_b
            x_proj = jnp.where(force_ref[t] > 0, trg_proj[:, t, :], fb_proj)


# -----------------------------------------------------------------------------
# Parameters
# -----------------------------------------------------------------------------
def init_params(key):
    ks = jax.random.split(key, 8)
    s = 0.1
    we_ih = s * jax.random.normal(ks[0], (INPUT_DIM, HID_DIM), jnp.float32)
    we_hh = s * jax.random.normal(ks[1], (HID_DIM, HID_DIM), jnp.float32)
    be = s * jax.random.normal(ks[2], (1, HID_DIM), jnp.float32)
    wd_ih = s * jax.random.normal(ks[3], (OUTPUT_DIM, HID_DIM), jnp.float32)
    wd_hh = s * jax.random.normal(ks[4], (HID_DIM, HID_DIM), jnp.float32)
    bd = s * jax.random.normal(ks[5], (1, HID_DIM), jnp.float32)
    wo = s * jax.random.normal(ks[6], (HID_DIM, OUTPUT_DIM), jnp.float32)
    bo = s * jax.random.normal(ks[7], (1, OUTPUT_DIM), jnp.float32)
    return (we_ih, we_hh, be, wd_ih, wd_hh, bd, wo, bo)


def prepare_params(params):
    """One-time (init-time) packing: fused + lane-aligned parameter slabs."""
    we_ih, we_hh, be, wd_ih, wd_hh, bd, wo, bo = params
    H, I, O = HID_DIM, INPUT_DIM, OUTPUT_DIM

    # Recurrent / fused decoder weights, each segment at a 128-lane boundary.
    w_slab = jnp.zeros((H, 512), jnp.float32)
    w_slab = w_slab.at[:, 0:H].set(we_hh)                     # encoder We_hh
    w_slab = w_slab.at[:, 128:128 + H].set(wd_hh)             # decoder Wd_hh
    w_slab = w_slab.at[:, 256:256 + O].set(wo)                # output Wo
    w_slab = w_slab.at[:, 384:384 + H].set(jnp.dot(wo, wd_ih))  # feedback Wo@Wd_ih

    # Block-diagonal input projection + all biases, in one small slab.
    p_slab = jnp.zeros((16, 256), jnp.float32)
    p_slab = p_slab.at[0:I, 0:H].set(we_ih)                   # src rows -> lanes 0:H
    p_slab = p_slab.at[I:I + O, 128:128 + H].set(wd_ih)       # trg rows -> lanes 128:128+H
    p_slab = p_slab.at[8, 0:H].set(be[0])                     # be
    p_slab = p_slab.at[8, 128:128 + H].set(bd[0])             # bd
    p_slab = p_slab.at[9, 0:O].set(bo[0])                     # bo
    p_slab = p_slab.at[9, 128:128 + H].set((jnp.dot(bo, wd_ih) + bd)[0])  # fb bias
    return (w_slab, p_slab)


# -----------------------------------------------------------------------------
# Forward
# -----------------------------------------------------------------------------
@functools.partial(jax.jit, static_argnames=("teacher_forcing_ratio",))
def _seq2seq_jit(w_slab, p_slab, src, trg, tf_key, teacher_forcing_ratio):
    B, S, I = src.shape
    O = OUTPUT_DIM

    # Teacher-forcing flags drawn inside the same jit (no extra dispatches).
    # TODO(synk): PyTorch draws python random.random() per decoder step; here the
    # decisions are sampled once per call from tf_key (same distribution).
    if teacher_forcing_ratio > 0.0:
        force = (jax.random.uniform(tf_key, (S,)) < teacher_forcing_ratio).astype(jnp.int32)
    else:
        force = jnp.zeros((S,), jnp.int32)

    # One combined, pre-flattened activation slab: [src | trg] per (b, t).
    act = jnp.concatenate(
        [src.astype(jnp.float32), trg.astype(jnp.float32)], axis=-1
    ).reshape(B * S, I + O)

    vmem = pl.BlockSpec(memory_space=pltpu.MemorySpace.VMEM)
    smem = pl.BlockSpec(memory_space=pltpu.MemorySpace.SMEM)

    # Tiny, strictly serial problem: no grid, no pipelining, everything resident
    # in VMEM/vregs. (Do NOT split across v7x's two TensorCores: the recurrence
    # is serial and B=2 lives in two sublanes of a single vreg.)
    return pl.pallas_call(
        _seq2seq_kernel,
        out_shape=jax.ShapeDtypeStruct((B, S, O), jnp.float32),
        in_specs=[smem, vmem, vmem, vmem],
        out_specs=vmem,
    )(force, act, w_slab, p_slab)


def seq2seq_forward(prepared, src, trg=None, teacher_forcing_ratio=0.5, tf_key=None):
    w_slab, p_slab = prepared
    B, S, _ = src.shape
    if trg is None:
        trg = jnp.zeros((B, S, OUTPUT_DIM), jnp.float32)
        teacher_forcing_ratio = 0.0
    if tf_key is None:
        tf_key = jax.random.PRNGKey(123)
    return _seq2seq_jit(w_slab, p_slab, src, trg, tf_key, float(teacher_forcing_ratio))


# -----------------------------------------------------------------------------
# Pure-JAX reference (mirrors the PyTorch forward, unfused math)
# -----------------------------------------------------------------------------
def _teacher_force_flags(S, ratio, key):
    if ratio <= 0.0:
        return jnp.zeros((S,), jnp.int32)
    if key is None:
        key = jax.random.PRNGKey(123)
    return (jax.random.uniform(key, (S,)) < ratio).astype(jnp.int32)


def seq2seq_reference(params, src, trg=None, teacher_forcing_ratio=0.5, tf_key=None):
    we_ih, we_hh, be, wd_ih, wd_hh, bd, wo, bo = params
    B, S, _ = src.shape
    if trg is None:
        trg = jnp.zeros((B, S, OUTPUT_DIM), jnp.float32)
        teacher_forcing_ratio = 0.0
    force = _teacher_force_flags(S, teacher_forcing_ratio, tf_key)

    h = jnp.zeros((B, HID_DIM), jnp.float32)
    for t in range(S):
        h = jnp.tanh(src[:, t, :] @ we_ih + h @ we_hh + be)

    outputs = jnp.zeros((B, S, OUTPUT_DIM), jnp.float32)
    x = trg[:, 0, :]
    for t in range(1, S):
        h = jnp.tanh(x @ wd_ih + h @ wd_hh + bd)
        out = h @ wo + bo
        outputs = outputs.at[:, t, :].set(out)
        x = jnp.where(force[t] > 0, trg[:, t, :], out)
    return outputs


# -----------------------------------------------------------------------------
if __name__ == "__main__":
    key = jax.random.PRNGKey(0)
    k_src, k_trg, k_params = jax.random.split(key, 3)

    B, S = 2, 8
    src = jax.random.normal(k_src, (B, S, INPUT_DIM), jnp.float32)
    trg = jax.random.normal(k_trg, (B, S, OUTPUT_DIM), jnp.float32)
    params = init_params(k_params)
    prepared = prepare_params(params)      # one-time packing, cached with params

    # 1) trg=None -> no teacher forcing, pure autoregressive feedback path.
    out0 = jax.block_until_ready(seq2seq_forward(prepared, src, trg=None))
    ref0 = seq2seq_reference(params, src, trg=None)
    assert out0.shape == (B, S, OUTPUT_DIM)
    assert jnp.allclose(out0, ref0, atol=1e-4, rtol=1e-4), "mismatch vs reference (no TF)"

    # 2) teacher forcing with the same externally-drawn flags in kernel and reference.
    tf_key = jax.random.PRNGKey(123)
    out1 = jax.block_until_ready(
        seq2seq_forward(prepared, src, trg=trg, teacher_forcing_ratio=0.5, tf_key=tf_key))
    ref1 = seq2seq_reference(params, src, trg=trg, teacher_forcing_ratio=0.5, tf_key=tf_key)
    assert jnp.allclose(out1, ref1, atol=1e-4, rtol=1e-4), "mismatch vs reference (TF=0.5)"

    print("KERNEL_OK")
</pallas_src>

<mosaic_0001>
module attributes {stable_mosaic.version = 11 : i64} {
  func.func @_seq2seq_kernel(%arg0: memref<8xi32, #tpu.memory_space<smem>>, %arg1: memref<16x8xf32, #tpu.memory_space<vmem>>, %arg2: memref<32x512xf32, #tpu.memory_space<vmem>>, %arg3: memref<16x256xf32, #tpu.memory_space<vmem>>, %arg4: memref<2x8x4xf32, #tpu.memory_space<vmem>>) attributes {dimension_semantics = [], scalar_prefetch = 0 : i64, scratch_operands = 0 : i64, tpu.core_type = #tpu.core_type<tc>} {
    %c0 = arith.constant 0 : index
    %c0_0 = arith.constant 0 : index
    %0 = vector.load %arg2[%c0, %c0_0] : memref<32x512xf32, #tpu.memory_space<vmem>>, vector<32x32xf32>
    %c0_1 = arith.constant 0 : index
    %c128 = arith.constant 128 : index
    %1 = vector.load %arg2[%c0_1, %c128] : memref<32x512xf32, #tpu.memory_space<vmem>>, vector<32x384xf32>
    %c0_2 = arith.constant 0 : index
    %c0_3 = arith.constant 0 : index
    %2 = vector.load %arg3[%c0_2, %c0_3] : memref<16x256xf32, #tpu.memory_space<vmem>>, vector<8x256xf32>
    %c8 = arith.constant 8 : index
    %c0_4 = arith.constant 0 : index
    %3 = vector.load %arg3[%c8, %c0_4] : memref<16x256xf32, #tpu.memory_space<vmem>>, vector<1x256xf32>
    %c9 = arith.constant 9 : index
    %c0_5 = arith.constant 0 : index
    %4 = vector.load %arg3[%c9, %c0_5] : memref<16x256xf32, #tpu.memory_space<vmem>>, vector<1x4xf32>
    %5 = vector.shape_cast %4 : vector<1x4xf32> to vector<1x4xf32>
    %6 = vector.broadcast %5 : vector<1x4xf32> to vector<2x4xf32>
    %c9_6 = arith.constant 9 : index
    %c128_7 = arith.constant 128 : index
    %7 = vector.load %arg3[%c9_6, %c128_7] : memref<16x256xf32, #tpu.memory_space<vmem>>, vector<1x32xf32>
    %8 = vector.shape_cast %7 : vector<1x32xf32> to vector<1x32xf32>
    %9 = vector.broadcast %8 : vector<1x32xf32> to vector<2x32xf32>
    %c0_8 = arith.constant 0 : index
    %c0_9 = arith.constant 0 : index
    %10 = vector.load %arg1[%c0_8, %c0_9] : memref<16x8xf32, #tpu.memory_space<vmem>>, vector<16x8xf32>
    %cst = arith.constant dense<0.000000e+00> : vector<16x256xf32>
    %11 = tpu.matmul %10, %2, %cst {dimension_numbers = #tpu.dot_dimension_numbers<[1], [0], [0], [1], [0, 0, 1, 1], [], []>} : vector<16x8xf32>, vector<8x256xf32>, vector<16x256xf32> -> vector<16x256xf32>
    %12 = vector.broadcast %3 : vector<1x256xf32> to vector<16x256xf32>
    %13 = arith.addf %11, %12 : vector<16x256xf32>
    %14 = vector.extract_strided_slice %13 {offsets = [0, 0], sizes = [16, 32], strides = [1, 1]} : vector<16x256xf32> to vector<16x32xf32>
    %15 = vector.shape_cast %14 : vector<16x32xf32> to vector<2x8x32xf32>
    %16 = vector.extract_strided_slice %13 {offsets = [0, 128], sizes = [16, 32], strides = [1, 1]} : vector<16x256xf32> to vector<16x32xf32>
    %17 = vector.shape_cast %16 : vector<16x32xf32> to vector<2x8x32xf32>
    %18 = vector.extract_strided_slice %15 {offsets = [0, 0, 0], sizes = [2, 1, 32], strides = [1, 1, 1]} : vector<2x8x32xf32> to vector<2x1x32xf32>
    %19 = vector.shape_cast %18 : vector<2x1x32xf32> to vector<2x32xf32>
    %20 = math.tanh %19 : vector<2x32xf32>
    %21 = vector.extract_strided_slice %15 {offsets = [0, 1, 0], sizes = [2, 1, 32], strides = [1, 1, 1]} : vector<2x8x32xf32> to vector<2x1x32xf32>
    %22 = vector.shape_cast %21 : vector<2x1x32xf32> to vector<2x32xf32>
    %cst_10 = arith.constant dense<0.000000e+00> : vector<2x32xf32>
    %23 = tpu.matmul %20, %0, %cst_10 {dimension_numbers = #tpu.dot_dimension_numbers<[1], [0], [0], [1], [0, 0, 1, 1], [], []>} : vector<2x32xf32>, vector<32x32xf32>, vector<2x32xf32> -> vector<2x32xf32>
    %24 = arith.addf %22, %23 : vector<2x32xf32>
    %25 = math.tanh %24 : vector<2x32xf32>
    %26 = vector.extract_strided_slice %15 {offsets = [0, 2, 0], sizes = [2, 1, 32], strides = [1, 1, 1]} : vector<2x8x32xf32> to vector<2x1x32xf32>
    %27 = vector.shape_cast %26 : vector<2x1x32xf32> to vector<2x32xf32>
    %cst_11 = arith.constant dense<0.000000e+00> : vector<2x32xf32>
    %28 = tpu.matmul %25, %0, %cst_11 {dimension_numbers = #tpu.dot_dimension_numbers<[1], [0], [0], [1], [0, 0, 1, 1], [], []>} : vector<2x32xf32>, vector<32x32xf32>, vector<2x32xf32> -> vector<2x32xf32>
    %29 = arith.addf %27, %28 : vector<2x32xf32>
    %30 = math.tanh %29 : vector<2x32xf32>
    %31 = vector.extract_strided_slice %15 {offsets = [0, 3, 0], sizes = [2, 1, 32], strides = [1, 1, 1]} : vector<2x8x32xf32> to vector<2x1x32xf32>
    %32 = vector.shape_cast %31 : vector<2x1x32xf32> to vector<2x32xf32>
    %cst_12 = arith.constant dense<0.000000e+00> : vector<2x32xf32>
    %33 = tpu.matmul %30, %0, %cst_12 {dimension_numbers = #tpu.dot_dimension_numbers<[1], [0], [0], [1], [0, 0, 1, 1], [], []>} : vector<2x32xf32>, vector<32x32xf32>, vector<2x32xf32> -> vector<2x32xf32>
    %34 = arith.addf %32, %33 : vector<2x32xf32>
    %35 = math.tanh %34 : vector<2x32xf32>
    %36 = vector.extract_strided_slice %15 {offsets = [0, 4, 0], sizes = [2, 1, 32], strides = [1, 1, 1]} : vector<2x8x32xf32> to vector<2x1x32xf32>
    %37 = vector.shape_cast %36 : vector<2x1x32xf32> to vector<2x32xf32>
    %cst_13 = arith.constant dense<0.000000e+00> : vector<2x32xf32>
    %38 = tpu.matmul %35, %0, %cst_13 {dimension_numbers = #tpu.dot_dimension_numbers<[1], [0], [0], [1], [0, 0, 1, 1], [], []>} : vector<2x32xf32>, vector<32x32xf32>, vector<2x32xf32> -> vector<2x32xf32>
    %39 = arith.addf %37, %38 : vector<2x32xf32>
    %40 = math.tanh %39 : vector<2x32xf32>
    %41 = vector.extract_strided_slice %15 {offsets = [0, 5, 0], sizes = [2, 1, 32], strides = [1, 1, 1]} : vector<2x8x32xf32> to vector<2x1x32xf32>
    %42 = vector.shape_cast %41 : vector<2x1x32xf32> to vector<2x32xf32>
    %cst_14 = arith.constant dense<0.000000e+00> : vector<2x32xf32>
    %43 = tpu.matmul %40, %0, %cst_14 {dimension_numbers = #tpu.dot_dimension_numbers<[1], [0], [0], [1], [0, 0, 1, 1], [], []>} : vector<2x32xf32>, vector<32x32xf32>, vector<2x32xf32> -> vector<2x32xf32>
    %44 = arith.addf %42, %43 : vector<2x32xf32>
    %45 = math.tanh %44 : vector<2x32xf32>
    %46 = vector.extract_strided_slice %15 {offsets = [0, 6, 0], sizes = [2, 1, 32], strides = [1, 1, 1]} : vector<2x8x32xf32> to vector<2x1x32xf32>
    %47 = vector.shape_cast %46 : vector<2x1x32xf32> to vector<2x32xf32>
    %cst_15 = arith.constant dense<0.000000e+00> : vector<2x32xf32>
    %48 = tpu.matmul %45, %0, %cst_15 {dimension_numbers = #tpu.dot_dimension_numbers<[1], [0], [0], [1], [0, 0, 1, 1], [], []>} : vector<2x32xf32>, vector<32x32xf32>, vector<2x32xf32> -> vector<2x32xf32>
    %49 = arith.addf %47, %48 : vector<2x32xf32>
    %50 = math.tanh %49 : vector<2x32xf32>
    %51 = vector.extract_strided_slice %15 {offsets = [0, 7, 0], sizes = [2, 1, 32], strides = [1, 1, 1]} : vector<2x8x32xf32> to vector<2x1x32xf32>
    %52 = vector.shape_cast %51 : vector<2x1x32xf32> to vector<2x32xf32>
    %cst_16 = arith.constant dense<0.000000e+00> : vector<2x32xf32>
    %53 = tpu.matmul %50, %0, %cst_16 {dimension_numbers = #tpu.dot_dimension_numbers<[1], [0], [0], [1], [0, 0, 1, 1], [], []>} : vector<2x32xf32>, vector<32x32xf32>, vector<2x32xf32> -> vector<2x32xf32>
    %54 = arith.addf %52, %53 : vector<2x32xf32>
    %55 = math.tanh %54 : vector<2x32xf32>
    %cst_17 = arith.constant 0.000000e+00 : f32
    %56 = vector.broadcast %cst_17 : f32 to vector<2x4xf32>
    %c0_18 = arith.constant 0 : index
    %c0_19 = arith.constant 0 : index
    %c0_20 = arith.constant 0 : index
    %57 = vector.load %arg4[%c0_18, %c0_19, %c0_20] : memref<2x8x4xf32, #tpu.memory_space<vmem>>, vector<2x1x4xf32>
    %58 = vector.shape_cast %57 : vector<2x1x4xf32> to vector<2x4xf32>
    %59 = vector.shape_cast %56 : vector<2x4xf32> to vector<2x1x4xf32>
    tpu.vector_store %arg4[%c0_18, %c0_19, %c0_20], %59 {strides = array<i32>} : memref<2x8x4xf32, #tpu.memory_space<vmem>>, vector<2x1x4xf32>,
    %60 = vector.extract_strided_slice %17 {offsets = [0, 0, 0], sizes = [2, 1, 32], strides = [1, 1, 1]} : vector<2x8x32xf32> to vector<2x1x32xf32>
    %61 = vector.shape_cast %60 : vector<2x1x32xf32> to vector<2x32xf32>
    %cst_21 = arith.constant dense<0.000000e+00> : vector<2x384xf32>
    %62 = tpu.matmul %55, %1, %cst_21 {dimension_numbers = #tpu.dot_dimension_numbers<[1], [0], [0], [1], [0, 0, 1, 1], [], []>} : vector<2x32xf32>, vector<32x384xf32>, vector<2x384xf32> -> vector<2x384xf32>
    %63 = vector.extract_strided_slice %62 {offsets = [0, 0], sizes = [2, 32], strides = [1, 1]} : vector<2x384xf32> to vector<2x32xf32>
    %64 = arith.addf %61, %63 : vector<2x32xf32>
    %65 = math.tanh %64 : vector<2x32xf32>
    %cst_22 = arith.constant dense<0.000000e+00> : vector<2x384xf32>
    %66 = tpu.matmul %65, %1, %cst_22 {dimension_numbers = #tpu.dot_dimension_numbers<[1], [0], [0], [1], [0, 0, 1, 1], [], []>} : vector<2x32xf32>, vector<32x384xf32>, vector<2x384xf32> -> vector<2x384xf32>
    %67 = vector.extract_strided_slice %66 {offsets = [0, 0], sizes = [2, 32], strides = [1, 1]} : vector<2x384xf32> to vector<2x32xf32>
    %68 = vector.extract_strided_slice %66 {offsets = [0, 128], sizes = [2, 4], strides = [1, 1]} : vector<2x384xf32> to vector<2x4xf32>
    %69 = arith.addf %68, %6 : vector<2x4xf32>
    %c0_23 = arith.constant 0 : index
    %c1 = arith.constant 1 : index
    %c0_24 = arith.constant 0 : index
    %70 = vector.load %arg4[%c0_23, %c1, %c0_24] : memref<2x8x4xf32, #tpu.memory_space<vmem>>, vector<2x1x4xf32>
    %71 = vector.shape_cast %70 : vector<2x1x4xf32> to vector<2x4xf32>
    %72 = vector.shape_cast %69 : vector<2x4xf32> to vector<2x1x4xf32>
    tpu.vector_store %arg4[%c0_23, %c1, %c0_24], %72 {strides = array<i32>} : memref<2x8x4xf32, #tpu.memory_space<vmem>>, vector<2x1x4xf32>,
    %73 = vector.extract_strided_slice %66 {offsets = [0, 256], sizes = [2, 32], strides = [1, 1]} : vector<2x384xf32> to vector<2x32xf32>
    %74 = arith.addf %73, %9 : vector<2x32xf32>
    %c1_25 = arith.constant 1 : index
    %75 = memref.load %arg0[%c1_25] : memref<8xi32, #tpu.memory_space<smem>>
    %c0_i32 = arith.constant 0 : i32
    %76 = arith.cmpi sgt, %75, %c0_i32 : i32
    %77 = vector.extract_strided_slice %17 {offsets = [0, 1, 0], sizes = [2, 1, 32], strides = [1, 1, 1]} : vector<2x8x32xf32> to vector<2x1x32xf32>
    %78 = vector.shape_cast %77 : vector<2x1x32xf32> to vector<2x32xf32>
    %79 = arith.select %76, %78, %74 : vector<2x32xf32>
    %80 = arith.addf %79, %67 : vector<2x32xf32>
    %81 = math.tanh %80 : vector<2x32xf32>
    %cst_26 = arith.constant dense<0.000000e+00> : vector<2x384xf32>
    %82 = tpu.matmul %81, %1, %cst_26 {dimension_numbers = #tpu.dot_dimension_numbers<[1], [0], [0], [1], [0, 0, 1, 1], [], []>} : vector<2x32xf32>, vector<32x384xf32>, vector<2x384xf32> -> vector<2x384xf32>
    %83 = vector.extract_strided_slice %82 {offsets = [0, 0], sizes = [2, 32], strides = [1, 1]} : vector<2x384xf32> to vector<2x32xf32>
    %84 = vector.extract_strided_slice %82 {offsets = [0, 128], sizes = [2, 4], strides = [1, 1]} : vector<2x384xf32> to vector<2x4xf32>
    %85 = arith.addf %84, %6 : vector<2x4xf32>
    %c0_27 = arith.constant 0 : index
    %c2 = arith.constant 2 : index
    %c0_28 = arith.constant 0 : index
    %86 = vector.load %arg4[%c0_27, %c2, %c0_28] : memref<2x8x4xf32, #tpu.memory_space<vmem>>, vector<2x1x4xf32>
    %87 = vector.shape_cast %86 : vector<2x1x4xf32> to vector<2x4xf32>
    %88 = vector.shape_cast %85 : vector<2x4xf32> to vector<2x1x4xf32>
    tpu.vector_store %arg4[%c0_27, %c2, %c0_28], %88 {strides = array<i32>} : memref<2x8x4xf32, #tpu.memory_space<vmem>>, vector<2x1x4xf32>,
    %89 = vector.extract_strided_slice %82 {offsets = [0, 256], sizes = [2, 32], strides = [1, 1]} : vector<2x384xf32> to vector<2x32xf32>
    %90 = arith.addf %89, %9 : vector<2x32xf32>
    %c2_29 = arith.constant 2 : index
    %91 = memref.load %arg0[%c2_29] : memref<8xi32, #tpu.memory_space<smem>>
    %c0_i32_30 = arith.constant 0 : i32
    %92 = arith.cmpi sgt, %91, %c0_i32_30 : i32
    %93 = vector.extract_strided_slice %17 {offsets = [0, 2, 0], sizes = [2, 1, 32], strides = [1, 1, 1]} : vector<2x8x32xf32> to vector<2x1x32xf32>
    %94 = vector.shape_cast %93 : vector<2x1x32xf32> to vector<2x32xf32>
    %95 = arith.select %92, %94, %90 : vector<2x32xf32>
    %96 = arith.addf %95, %83 : vector<2x32xf32>
    %97 = math.tanh %96 : vector<2x32xf32>
    %cst_31 = arith.constant dense<0.000000e+00> : vector<2x384xf32>
    %98 = tpu.matmul %97, %1, %cst_31 {dimension_numbers = #tpu.dot_dimension_numbers<[1], [0], [0], [1], [0, 0, 1, 1], [], []>} : vector<2x32xf32>, vector<32x384xf32>, vector<2x384xf32> -> vector<2x384xf32>
    %99 = vector.extract_strided_slice %98 {offsets = [0, 0], sizes = [2, 32], strides = [1, 1]} : vector<2x384xf32> to vector<2x32xf32>
    %100 = vector.extract_strided_slice %98 {offsets = [0, 128], sizes = [2, 4], strides = [1, 1]} : vector<2x384xf32> to vector<2x4xf32>
    %101 = arith.addf %100, %6 : vector<2x4xf32>
    %c0_32 = arith.constant 0 : index
    %c3 = arith.constant 3 : index
    %c0_33 = arith.constant 0 : index
    %102 = vector.load %arg4[%c0_32, %c3, %c0_33] : memref<2x8x4xf32, #tpu.memory_space<vmem>>, vector<2x1x4xf32>
    %103 = vector.shape_cast %102 : vector<2x1x4xf32> to vector<2x4xf32>
    %104 = vector.shape_cast %101 : vector<2x4xf32> to vector<2x1x4xf32>
    tpu.vector_store %arg4[%c0_32, %c3, %c0_33], %104 {strides = array<i32>} : memref<2x8x4xf32, #tpu.memory_space<vmem>>, vector<2x1x4xf32>,
    %105 = vector.extract_strided_slice %98 {offsets = [0, 256], sizes = [2, 32], strides = [1, 1]} : vector<2x384xf32> to vector<2x32xf32>
    %106 = arith.addf %105, %9 : vector<2x32xf32>
    %c3_34 = arith.constant 3 : index
    %107 = memref.load %arg0[%c3_34] : memref<8xi32, #tpu.memory_space<smem>>
    %c0_i32_35 = arith.constant 0 : i32
    %108 = arith.cmpi sgt, %107, %c0_i32_35 : i32
    %109 = vector.extract_strided_slice %17 {offsets = [0, 3, 0], sizes = [2, 1, 32], strides = [1, 1, 1]} : vector<2x8x32xf32> to vector<2x1x32xf32>
    %110 = vector.shape_cast %109 : vector<2x1x32xf32> to vector<2x32xf32>
    %111 = arith.select %108, %110, %106 : vector<2x32xf32>
    %112 = arith.addf %111, %99 : vector<2x32xf32>
    %113 = math.tanh %112 : vector<2x32xf32>
    %cst_36 = arith.constant dense<0.000000e+00> : vector<2x384xf32>
    %114 = tpu.matmul %113, %1, %cst_36 {dimension_numbers = #tpu.dot_dimension_numbers<[1], [0], [0], [1], [0, 0, 1, 1], [], []>} : vector<2x32xf32>, vector<32x384xf32>, vector<2x384xf32> -> vector<2x384xf32>
    %115 = vector.extract_strided_slice %114 {offsets = [0, 0], sizes = [2, 32], strides = [1, 1]} : vector<2x384xf32> to vector<2x32xf32>
    %116 = vector.extract_strided_slice %114 {offsets = [0, 128], sizes = [2, 4], strides = [1, 1]} : vector<2x384xf32> to vector<2x4xf32>
    %117 = arith.addf %116, %6 : vector<2x4xf32>
    %c0_37 = arith.constant 0 : index
    %c4 = arith.constant 4 : index
    %c0_38 = arith.constant 0 : index
    %118 = vector.load %arg4[%c0_37, %c4, %c0_38] : memref<2x8x4xf32, #tpu.memory_space<vmem>>, vector<2x1x4xf32>
    %119 = vector.shape_cast %118 : vector<2x1x4xf32> to vector<2x4xf32>
    %120 = vector.shape_cast %117 : vector<2x4xf32> to vector<2x1x4xf32>
    tpu.vector_store %arg4[%c0_37, %c4, %c0_38], %120 {strides = array<i32>} : memref<2x8x4xf32, #tpu.memory_space<vmem>>, vector<2x1x4xf32>,
    %121 = vector.extract_strided_slice %114 {offsets = [0, 256], sizes = [2, 32], strides = [1, 1]} : vector<2x384xf32> to vector<2x32xf32>
    %122 = arith.addf %121, %9 : vector<2x32xf32>
    %c4_39 = arith.constant 4 : index
    %123 = memref.load %arg0[%c4_39] : memref<8xi32, #tpu.memory_space<smem>>
    %c0_i32_40 = arith.constant 0 : i32
    %124 = arith.cmpi sgt, %123, %c0_i32_40 : i32
    %125 = vector.extract_strided_slice %17 {offsets = [0, 4, 0], sizes = [2, 1, 32], strides = [1, 1, 1]} : vector<2x8x32xf32> to vector<2x1x32xf32>
    %126 = vector.shape_cast %125 : vector<2x1x32xf32> to vector<2x32xf32>
    %127 = arith.select %124, %126, %122 : vector<2x32xf32>
    %128 = arith.addf %127, %115 : vector<2x32xf32>
    %129 = math.tanh %128 : vector<2x32xf32>
    %cst_41 = arith.constant dense<0.000000e+00> : vector<2x384xf32>
    %130 = tpu.matmul %129, %1, %cst_41 {dimension_numbers = #tpu.dot_dimension_numbers<[1], [0], [0], [1], [0, 0, 1, 1], [], []>} : vector<2x32xf32>, vector<32x384xf32>, vector<2x384xf32> -> vector<2x384xf32>
    %131 = vector.extract_strided_slice %130 {offsets = [0, 0], sizes = [2, 32], strides = [1, 1]} : vector<2x384xf32> to vector<2x32xf32>
    %132 = vector.extract_strided_slice %130 {offsets = [0, 128], sizes = [2, 4], strides = [1, 1]} : vector<2x384xf32> to vector<2x4xf32>
    %133 = arith.addf %132, %6 : vector<2x4xf32>
    %c0_42 = arith.constant 0 : index
    %c5 = arith.constant 5 : index
    %c0_43 = arith.constant 0 : index
    %134 = vector.load %arg4[%c0_42, %c5, %c0_43] : memref<2x8x4xf32, #tpu.memory_space<vmem>>, vector<2x1x4xf32>
    %135 = vector.shape_cast %134 : vector<2x1x4xf32> to vector<2x4xf32>
    %136 = vector.shape_cast %133 : vector<2x4xf32> to vector<2x1x4xf32>
    tpu.vector_store %arg4[%c0_42, %c5, %c0_43], %136 {strides = array<i32>} : memref<2x8x4xf32, #tpu.memory_space<vmem>>, vector<2x1x4xf32>,
    %137 = vector.extract_strided_slice %130 {offsets = [0, 256], sizes = [2, 32], strides = [1, 1]} : vector<2x384xf32> to vector<2x32xf32>
    %138 = arith.addf %137, %9 : vector<2x32xf32>
    %c5_44 = arith.constant 5 : index
    %139 = memref.load %arg0[%c5_44] : memref<8xi32, #tpu.memory_space<smem>>
    %c0_i32_45 = arith.constant 0 : i32
    %140 = arith.cmpi sgt, %139, %c0_i32_45 : i32
    %141 = vector.extract_strided_slice %17 {offsets = [0, 5, 0], sizes = [2, 1, 32], strides = [1, 1, 1]} : vector<2x8x32xf32> to vector<2x1x32xf32>
    %142 = vector.shape_cast %141 : vector<2x1x32xf32> to vector<2x32xf32>
    %143 = arith.select %140, %142, %138 : vector<2x32xf32>
    %144 = arith.addf %143, %131 : vector<2x32xf32>
    %145 = math.tanh %144 : vector<2x32xf32>
    %cst_46 = arith.constant dense<0.000000e+00> : vector<2x384xf32>
    %146 = tpu.matmul %145, %1, %cst_46 {dimension_numbers = #tpu.dot_dimension_numbers<[1], [0], [0], [1], [0, 0, 1, 1], [], []>} : vector<2x32xf32>, vector<32x384xf32>, vector<2x384xf32> -> vector<2x384xf32>
    %147 = vector.extract_strided_slice %146 {offsets = [0, 0], sizes = [2, 32], strides = [1, 1]} : vector<2x384xf32> to vector<2x32xf32>
    %148 = vector.extract_strided_slice %146 {offsets = [0, 128], sizes = [2, 4], strides = [1, 1]} : vector<2x384xf32> to vector<2x4xf32>
    %149 = arith.addf %148, %6 : vector<2x4xf32>
    %c0_47 = arith.constant 0 : index
    %c6 = arith.constant 6 : index
    %c0_48 = arith.constant 0 : index
    %150 = vector.load %arg4[%c0_47, %c6, %c0_48] : memref<2x8x4xf32, #tpu.memory_space<vmem>>, vector<2x1x4xf32>
    %151 = vector.shape_cast %150 : vector<2x1x4xf32> to vector<2x4xf32>
    %152 = vector.shape_cast %149 : vector<2x4xf32> to vector<2x1x4xf32>
    tpu.vector_store %arg4[%c0_47, %c6, %c0_48], %152 {strides = array<i32>} : memref<2x8x4xf32, #tpu.memory_space<vmem>>, vector<2x1x4xf32>,
    %153 = vector.extract_strided_slice %146 {offsets = [0, 256], sizes = [2, 32], strides = [1, 1]} : vector<2x384xf32> to vector<2x32xf32>
    %154 = arith.addf %153, %9 : vector<2x32xf32>
    %c6_49 = arith.constant 6 : index
    %155 = memref.load %arg0[%c6_49] : memref<8xi32, #tpu.memory_space<smem>>
    %c0_i32_50 = arith.constant 0 : i32
    %156 = arith.cmpi sgt, %155, %c0_i32_50 : i32
    %157 = vector.extract_strided_slice %17 {offsets = [0, 6, 0], sizes = [2, 1, 32], strides = [1, 1, 1]} : vector<2x8x32xf32> to vector<2x1x32xf32>
    %158 = vector.shape_cast %157 : vector<2x1x32xf32> to vector<2x32xf32>
    %159 = arith.select %156, %158, %154 : vector<2x32xf32>
    %160 = arith.addf %159, %147 : vector<2x32xf32>
    %161 = math.tanh %160 : vector<2x32xf32>
    %cst_51 = arith.constant dense<0.000000e+00> : vector<2x384xf32>
    %162 = tpu.matmul %161, %1, %cst_51 {dimension_numbers = #tpu.dot_dimension_numbers<[1], [0], [0], [1], [0, 0, 1, 1], [], []>} : vector<2x32xf32>, vector<32x384xf32>, vector<2x384xf32> -> vector<2x384xf32>
    %163 = vector.extract_strided_slice %162 {offsets = [0, 128], sizes = [2, 4], strides = [1, 1]} : vector<2x384xf32> to vector<2x4xf32>
    %164 = arith.addf %163, %6 : vector<2x4xf32>
    %c0_52 = arith.constant 0 : index
    %c7 = arith.constant 7 : index
    %c0_53 = arith.constant 0 : index
    %165 = vector.load %arg4[%c0_52, %c7, %c0_53] : memref<2x8x4xf32, #tpu.memory_space<vmem>>, vector<2x1x4xf32>
    %166 = vector.shape_cast %165 : vector<2x1x4xf32> to vector<2x4xf32>
    %167 = vector.shape_cast %164 : vector<2x4xf32> to vector<2x1x4xf32>
    tpu.vector_store %arg4[%c0_52, %c7, %c0_53], %167 {strides = array<i32>} : memref<2x8x4xf32, #tpu.memory_space<vmem>>, vector<2x1x4xf32>,
    return
  }
}

</mosaic_0001>

<llo_original>
// kernel: _seq2seq_jit.1
$region0: #{_seq2seq_jit.1}
  #allocation0 [shape = 'u32[]', space=smem, size = 0x4, offset = 0x4, fixed_abs, tag = 'smem constant byte address 0x4 - core index']
  #allocation1 [shape = 'u32[144,128]{1,0:T(1,128)}', space=vmem, size = 0x12000, scoped, tag = 'internal scratch']
  %s0 = inlined_call_operand.vmem [shape: s32[8], index: 0, kind: input, shape index: {}]
  %s1 = inlined_call_operand.vmem [shape: f32[16,8], index: 1, kind: input, shape index: {}]
  %s2 = inlined_call_operand.hbm [shape: f32[32,512], index: 2, kind: input, shape index: {}]
  %s3 = inlined_call_operand.vmem [shape: f32[16,256], index: 3, kind: input, shape index: {}]
  %s4 = inlined_call_operand.vmem [shape: f32[2,8,4], index: 4, kind: output, shape index: {}]
  %s5 = sld [smem:[#allocation0]]
  $region34: #{_seq2seq_jit.1} parent=0
    _
  %s7 = ssub.s32 1, %s5
  %s8 = scalar_select 0, %s7, %s5
  $region1: #{_seq2seq_jit.1} parent=0
    #allocation2 [shape = 'u8[512]{0}', space=smem, size = 0x200, scoped, tag = 'input window, operand 0, single buffered']
    #allocation3 [shape = 's32[1]{0}', space=sflag, size = 0x4, scoped, tag = 'scoped memory for _seq2seq_jit.1']
    #allocation4 [shape = 's32[1]{0}', space=sflag, size = 0x4, scoped, tag = 'scoped memory for _seq2seq_jit.1']
    #allocation5 [shape = 'u8[65536]{0}', space=vmem, size = 0x10000, scoped, tag = 'input window, operand 2, single buffered']
    %9 = vsyncpa [#allocation4], 0
    %10 = vsyncpa [#allocation3], 0
    // Predicated region
    $region2: #{_seq2seq_jit.1} parent=1 // pred_check
      _
    $region3: #{_seq2seq_jit.1} parent=1 // pred_check_branch
      %12 = sbr.rel (0) target = $region5
    $region4: #{_seq2seq_jit.1} parent=1 // pred_region
      %s14 = ssub.s32 16, 16
      %15 = vsyncadd [#allocation4], %s14
      %s17 = sshll.u32 %s0, 4
      %s18 = int_to_ptr.vmem [resolvable:$true] %s17
      %20 = dma.vmem_to_smem %s18, 16, [#allocation2], [#allocation4]
    $region5: #{_seq2seq_jit.1} parent=1 // pred_fallthru
      _
    // Predicated region
    $region6: #{_seq2seq_jit.1} parent=1 // pred_check
      _
    $region7: #{_seq2seq_jit.1} parent=1 // pred_check_branch
      %22 = sbr.rel (0) target = $region9
    $region8: #{_seq2seq_jit.1} parent=1 // pred_region
      _
    $region9: #{_seq2seq_jit.1} parent=1 // pred_fallthru
      _
    // Predicated region
    $region10: #{_seq2seq_jit.1} parent=1 // pred_check
      _
    $region11: #{_seq2seq_jit.1} parent=1 // pred_check_branch
      %24 = sbr.rel (0) target = $region13
    $region12: #{_seq2seq_jit.1} parent=1 // pred_region
      %s26 = ssub.s32 2048, 2048
      %27 = vsyncadd [#allocation3], %s26
      %s28 = sshll.u32 [#allocation5], 4
      %s29 = int_to_ptr.vmem [resolvable:$true] %s28
      %34 = dma.hbm_to_vmem [thread:$0]  %s2, 2048, %s29, [#allocation3], 512, 512, 32
    $region13: #{_seq2seq_jit.1} parent=1 // pred_fallthru
      _
    // Predicated region
    $region14: #{_seq2seq_jit.1} parent=1 // pred_check
      _
    $region15: #{_seq2seq_jit.1} parent=1 // pred_check_branch
      %36 = sbr.rel (0) target = $region17
    $region16: #{_seq2seq_jit.1} parent=1 // pred_region
      _
    $region17: #{_seq2seq_jit.1} parent=1 // pred_fallthru
      _
    // Predicated region
    $region18: #{_seq2seq_jit.1} parent=1 // pred_check
      _
    $region19: #{_seq2seq_jit.1} parent=1 // pred_check_branch
      %38 = sbr.rel (0) target = $region21
    $region20: #{_seq2seq_jit.1} parent=1 // pred_region
      %39 = dma.done [#allocation4], 16
    $region21: #{_seq2seq_jit.1} parent=1 // pred_fallthru
      _
    // Predicated region
    $region22: #{_seq2seq_jit.1} parent=1 // pred_check
      _
    $region23: #{_seq2seq_jit.1} parent=1 // pred_check_branch
      %41 = sbr.rel (0) target = $region25
    $region24: #{_seq2seq_jit.1} parent=1 // pred_region
      %42 = dma.done [#allocation3], 2048
    $region25: #{_seq2seq_jit.1} parent=1 // pred_fallthru
      _
    %43 = sfence
    %v44 = vld [vmem:[#allocation5] sm:$0xff]
    %v45 = vld [vmem:[#allocation5 + $0x20] sm:$0xff]
    %v46 = vld [vmem:[#allocation5 + $0x40] sm:$0xff]
    %v47 = vld [vmem:[#allocation5 + $0x60] sm:$0xff]
    %v48 = vld [vmem:[#allocation5 + $0x8] sm:$0xff]
    %v49 = vld [vmem:[#allocation5 + $0x10] sm:$0xff]
    %v50 = vld [vmem:[#allocation5 + $0x18] sm:$0xff]
    %v51 = vld [vmem:[#allocation5 + $0x28] sm:$0xff]
    %v52 = vld [vmem:[#allocation5 + $0x30] sm:$0xff]
    %v53 = vld [vmem:[#allocation5 + $0x38] sm:$0xff]
    %v54 = vld [vmem:[#allocation5 + $0x48] sm:$0xff]
    %v55 = vld [vmem:[#allocation5 + $0x50] sm:$0xff]
    %v56 = vld [vmem:[#allocation5 + $0x58] sm:$0xff]
    %v57 = vld [vmem:[#allocation5 + $0x68] sm:$0xff]
    %v58 = vld [vmem:[#allocation5 + $0x70] sm:$0xff]
    %v59 = vld [vmem:[#allocation5 + $0x78] sm:$0xff]
    %v60 = vld [vmem:[%s3] sm:$0xff]
    %v61 = vld [vmem:[%s3 + $0x8] sm:$0xff]
    %s62 = scalar_lea.vmem %s3, 16
    %v63 = vld [vmem:[%s62] ss:$8 sm:$0x3]
    %v64 = vld [vmem:[%s3 + $0x11] ss:$0 sm:$0xff]
    %v65 = vld [vmem:[%s3 + $0x19] ss:$0 sm:$0xff]
    %v66 = vld [vmem:[%s1] sm:$0xff]
    %v67 = vld [vmem:[%s1 + $0x8] sm:$0xff]
    %v69 = vlaneseq
    %v70 = vshrl.u32 %v69, 7
    %v71 = vsub.s32 0, %v70
    %v72 = vrot.slane %v63, %v71
    %v73 = vlaneseq
    %v74 = vshrl.u32 %v73, 7
    %v75 = vsub.s32 1, %v74
    %v76 = vrot.slane %v63, %v75
    %vm79 = vcmask 64512
    %v81 = vsel %vm79, %v66, 0
    %v84 = vsel %vm79, %v67, 0
    %86 = vmatprep.subr.mxu0 %v61
    %87 = vmatpush1.msra.mxu0 %v60
    %88 = vmatprep.subr.mxu0 0.0
    %89 = vmatpush1.msra.mxu0 0.0
    %90 = vmatprep.subr.mxu0 0.0
    %91 = vmatpush1.msra.mxu0 0.0
    %92 = vmatprep.subr.mxu0 0.0
    %93 = vmatpush1.msra.mxu0 0.0
    %94 = vmatprep.subr.mxu0 0.0
    %95 = vmatpush1.msra.mxu0 0.0
    %96 = vmatprep.subr.mxu0 0.0
    %97 = vmatpush1.msra.mxu0 0.0
    %98 = vmatprep.subr.mxu0 0.0
    %99 = vmatpush1.msra.mxu0 0.0
    %100 = vmatprep.subr.mxu0 0.0
    %101 = vmatpush1.msra.mxu0 0.0
    %102 = vmatprep.subr.mxu0 0.0
    %103 = vmatpush1.msra.mxu0 0.0
    %104 = vmatprep.subr.mxu0 0.0
    %105 = vmatpush1.msra.mxu0 0.0
    %106 = vmatprep.subr.mxu0 0.0
    %107 = vmatpush1.msra.mxu0 0.0
    %108 = vmatprep.subr.mxu0 0.0
    %109 = vmatpush1.msra.mxu0 0.0
    %110 = vmatprep.subr.mxu0 0.0
    %111 = vmatpush1.msra.mxu0 0.0
    %112 = vmatprep.subr.mxu0 0.0
    %113 = vmatpush1.msra.mxu0 0.0
    %114 = vmatprep.subr.mxu0 0.0
    %115 = vmatpush1.msra.mxu0 0.0
    %116 = vmatprep.subr.mxu0 0.0
    %117 = vmatpush1.msra.mxu0 0.0
    %118 = vmatprep.subr.mxu0 0.0
    %119 = vmatpush1.msra.mxu0 0.0
    %120 = vmatprep.subr.mxu0 0.0
    %121 = vmatpush1.msra.mxu0 0.0
    %122 = vmatprep.subr.mxu0 0.0
    %123 = vmatpush1.msra.mxu0 0.0
    %124 = vmatprep.subr.mxu0 0.0
    %125 = vmatpush1.msra.mxu0 0.0
    %126 = vmatprep.subr.mxu0 0.0
    %127 = vmatpush1.msra.mxu0 0.0
    %128 = vmatprep.subr.mxu0 0.0
    %129 = vmatpush1.msra.mxu0 0.0
    %130 = vmatprep.subr.mxu0 0.0
    %131 = vmatpush1.msra.mxu0 0.0
    %132 = vmatprep.subr.mxu0 0.0
    %133 = vmatpush1.msra.mxu0 0.0
    %134 = vmatprep.subr.mxu0 0.0
    %135 = vmatpush1.msra.mxu0 0.0
    %136 = vmatprep.subr.mxu0 0.0
    %137 = vmatpush1.msra.mxu0 0.0
    %138 = vmatprep.subr.mxu0 0.0
    %139 = vmatpush1.msra.mxu0 0.0
    %140 = vmatprep.subr.mxu0 0.0
    %141 = vmatpush1.msra.mxu0 0.0
    %142 = vmatprep.subr.mxu0 0.0
    %143 = vmatpush1.msra.mxu0 0.0
    %144 = vmatprep.subr.mxu0 0.0
    %145 = vmatpush1.msra.mxu0 0.0
    %146 = vmatprep.subr.mxu0 0.0
    %147 = vmatpush1.msra.mxu0 0.0
    %148 = vmatprep.subr.mxu0 0.0
    %149 = vmatpush1.msra.mxu0 0.0
    %150 = vmatprep.mubr.f32.mxu0 0.0
    %151 = vmatmul.mubr.f32.gmra.mrb[0].mxu0 %v81
    %v152 = vpop.f32.mrb[0].mxu0
    %v153 = vadd.f32 %v72, %v152
    %v154 = vpop.f32.mrb[0].mxu0
    %v155 = vadd.f32 %v76, %v154
    %156 = vmatprep.mubr.f32.mxu0 0.0
    %157 = vmatmul.mubr.f32.gmra.mrb[0].mxu0 %v84
    %v158 = vpop.f32.mrb[0].mxu0
    %v159 = vadd.f32 %v72, %v158
    %v160 = vpop.f32.mrb[0].mxu0
    %v161 = vadd.f32 %v76, %v160
    %162 = vdwg.mxu0
    %v163 = vtanh.pop %v153
    %v164 = vtanh.pop %v159
    %v167 = vrot.slane %v164, 7
    %vm168 = vcmask 1041409
    %v169 = vsel %vm168, %v167, %v163
    %vm170 = vcmask 261120
    %v171 = vsel %vm170, %v169, 0
    %173 = vmatprep.subr.mxu0 0.0
    %174 = vmatpush1.msra.mxu0 %v44
    %175 = vmatprep.subr.mxu0 0.0
    %176 = vmatpush1.msra.mxu0 %v45
    %177 = vmatprep.subr.mxu0 0.0
    %178 = vmatpush1.msra.mxu0 %v46
    %179 = vmatprep.subr.mxu0 0.0
    %180 = vmatpush1.msra.mxu0 %v47
    %181 = vmatprep.subr.mxu0 0.0
    %182 = vmatpush1.msra.mxu0 0.0
    %183 = vmatprep.subr.mxu0 0.0
    %184 = vmatpush1.msra.mxu0 0.0
    %185 = vmatprep.subr.mxu0 0.0
    %186 = vmatpush1.msra.mxu0 0.0
    %187 = vmatprep.subr.mxu0 0.0
    %188 = vmatpush1.msra.mxu0 0.0
    %189 = vmatprep.subr.mxu0 0.0
    %190 = vmatpush1.msra.mxu0 0.0
    %191 = vmatprep.subr.mxu0 0.0
    %192 = vmatpush1.msra.mxu0 0.0
    %193 = vmatprep.subr.mxu0 0.0
    %194 = vmatpush1.msra.mxu0 0.0
    %195 = vmatprep.subr.mxu0 0.0
    %196 = vmatpush1.msra.mxu0 0.0
    %197 = vmatprep.subr.mxu0 0.0
    %198 = vmatpush1.msra.mxu0 0.0
    %199 = vmatprep.subr.mxu0 0.0
    %200 = vmatpush1.msra.mxu0 0.0
    %201 = vmatprep.subr.mxu0 0.0
    %202 = vmatpush1.msra.mxu0 0.0
    %203 = vmatprep.subr.mxu0 0.0
    %204 = vmatpush1.msra.mxu0 0.0
    %205 = vmatprep.subr.mxu0 0.0
    %206 = vmatpush1.msra.mxu0 0.0
    %207 = vmatprep.subr.mxu0 0.0
    %208 = vmatpush1.msra.mxu0 0.0
    %209 = vmatprep.subr.mxu0 0.0
    %210 = vmatpush1.msra.mxu0 0.0
    %211 = vmatprep.subr.mxu0 0.0
    %212 = vmatpush1.msra.mxu0 0.0
    %213 = vmatprep.subr.mxu0 0.0
    %214 = vmatpush1.msra.mxu0 0.0
    %215 = vmatprep.subr.mxu0 0.0
    %216 = vmatpush1.msra.mxu0 0.0
    %217 = vmatprep.subr.mxu0 0.0
    %218 = vmatpush1.msra.mxu0 0.0
    %219 = vmatprep.subr.mxu0 0.0
    %220 = vmatpush1.msra.mxu0 0.0
    %221 = vmatprep.subr.mxu0 0.0
    %222 = vmatpush1.msra.mxu0 0.0
    %223 = vmatprep.subr.mxu0 0.0
    %224 = vmatpush1.msra.mxu0 0.0
    %225 = vmatprep.subr.mxu0 0.0
    %226 = vmatpush1.msra.mxu0 0.0
    %227 = vmatprep.subr.mxu0 0.0
    %228 = vmatpush1.msra.mxu0 0.0
    %229 = vmatprep.subr.mxu0 0.0
    %230 = vmatpush1.msra.mxu0 0.0
    %231 = vmatprep.subr.mxu0 0.0
    %232 = vmatpush1.msra.mxu0 0.0
    %233 = vmatprep.subr.mxu0 0.0
    %234 = vmatpush1.msra.mxu0 0.0
    %235 = vmatprep.subr.mxu0 0.0
    %236 = vmatpush1.msra.mxu0 0.0
    %237 = vmatprep.mubr.f32.mxu0 0.0
    %238 = vmatmul.mubr.f32.gmra.mrb[0].mxu0 %v171
    %v239 = vpop.f32.mrb[0].mxu0
    %v240 = vadd.f32 0.0, %v239
    %v241 = vpop.f32.mrb[0].mxu0
    %242 = vdwg.mxu0
    %v244 = vrot.slane %v240, 7
    %v247 = vadd.f32 %v153, %v244
    %v248 = vadd.f32 %v159, %v240
    %v249 = vtanh.pop %v247
    %v250 = vtanh.pop %v248
    %v253 = vrot.slane %v249, 1
    %v254 = vsel %vm168, %v250, %v253
    %v255 = vsel %vm170, %v254, 0
    %257 = vmatprep.subr.mxu0 0.0
    %258 = vmatpush1.msra.mxu0 %v44
    %259 = vmatprep.subr.mxu0 0.0
    %260 = vmatpush1.msra.mxu0 %v45
    %261 = vmatprep.subr.mxu0 0.0
    %262 = vmatpush1.msra.mxu0 %v46
    %263 = vmatprep.subr.mxu0 0.0
    %264 = vmatpush1.msra.mxu0 %v47
    %265 = vmatprep.subr.mxu0 0.0
    %266 = vmatpush1.msra.mxu0 0.0
    %267 = vmatprep.subr.mxu0 0.0
    %268 = vmatpush1.msra.mxu0 0.0
    %269 = vmatprep.subr.mxu0 0.0
    %270 = vmatpush1.msra.mxu0 0.0
    %271 = vmatprep.subr.mxu0 0.0
    %272 = vmatpush1.msra.mxu0 0.0
    %273 = vmatprep.subr.mxu0 0.0
    %274 = vmatpush1.msra.mxu0 0.0
    %275 = vmatprep.subr.mxu0 0.0
    %276 = vmatpush1.msra.mxu0 0.0
    %277 = vmatprep.subr.mxu0 0.0
    %278 = vmatpush1.msra.mxu0 0.0
    %279 = vmatprep.subr.mxu0 0.0
    %280 = vmatpush1.msra.mxu0 0.0
    %281 = vmatprep.subr.mxu0 0.0
    %282 = vmatpush1.msra.mxu0 0.0
    %283 = vmatprep.subr.mxu0 0.0
    %284 = vmatpush1.msra.mxu0 0.0
    %285 = vmatprep.subr.mxu0 0.0
    %286 = vmatpush1.msra.mxu0 0.0
    %287 = vmatprep.subr.mxu0 0.0
    %288 = vmatpush1.msra.mxu0 0.0
    %289 = vmatprep.subr.mxu0 0.0
    %290 = vmatpush1.msra.mxu0 0.0
    %291 = vmatprep.subr.mxu0 0.0
    %292 = vmatpush1.msra.mxu0 0.0
    %293 = vmatprep.subr.mxu0 0.0
    %294 = vmatpush1.msra.mxu0 0.0
    %295 = vmatprep.subr.mxu0 0.0
    %296 = vmatpush1.msra.mxu0 0.0
    %297 = vmatprep.subr.mxu0 0.0
    %298 = vmatpush1.msra.mxu0 0.0
    %299 = vmatprep.subr.mxu0 0.0
    %300 = vmatpush1.msra.mxu0 0.0
    %301 = vmatprep.subr.mxu0 0.0
    %302 = vmatpush1.msra.mxu0 0.0
    %303 = vmatprep.subr.mxu0 0.0
    %304 = vmatpush1.msra.mxu0 0.0
    %305 = vmatprep.subr.mxu0 0.0
    %306 = vmatpush1.msra.mxu0 0.0
    %307 = vmatprep.subr.mxu0 0.0
    %308 = vmatpush1.msra.mxu0 0.0
    %309 = vmatprep.subr.mxu0 0.0
    %310 = vmatpush1.msra.mxu0 0.0
    %311 = vmatprep.subr.mxu0 0.0
    %312 = vmatpush1.msra.mxu0 0.0
    %313 = vmatprep.subr.mxu0 0.0
    %314 = vmatpush1.msra.mxu0 0.0
    %315 = vmatprep.subr.mxu0 0.0
    %316 = vmatpush1.msra.mxu0 0.0
    %317 = vmatprep.subr.mxu0 0.0
    %318 = vmatpush1.msra.mxu0 0.0
    %319 = vmatprep.subr.mxu0 0.0
    %320 = vmatpush1.msra.mxu0 0.0
    %321 = vmatprep.mubr.f32.mxu0 0.0
    %322 = vmatmul.mubr.f32.gmra.mrb[0].mxu0 %v255
    %v323 = vpop.f32.mrb[0].mxu0
    %v324 = vadd.f32 0.0, %v323
    %v325 = vpop.f32.mrb[0].mxu0
    %326 = vdwg.mxu0
    %v328 = vrot.slane %v324, 6
    %v329 = vrot.slane %v324, 7
    %v332 = vadd.f32 %v153, %v328
    %v333 = vadd.f32 %v159, %v329
    %v334 = vtanh.pop %v332
    %v335 = vtanh.pop %v333
    %v338 = vrot.slane %v334, 2
    %v339 = vrot.slane %v335, 1
    %v340 = vsel %vm168, %v339, %v338
    %v341 = vsel %vm170, %v340, 0
    %343 = vmatprep.subr.mxu0 0.0
    %344 = vmatpush1.msra.mxu0 %v44
    %345 = vmatprep.subr.mxu0 0.0
    %346 = vmatpush1.msra.mxu0 %v45
    %347 = vmatprep.subr.mxu0 0.0
    %348 = vmatpush1.msra.mxu0 %v46
    %349 = vmatprep.subr.mxu0 0.0
    %350 = vmatpush1.msra.mxu0 %v47
    %351 = vmatprep.subr.mxu0 0.0
    %352 = vmatpush1.msra.mxu0 0.0
    %353 = vmatprep.subr.mxu0 0.0
    %354 = vmatpush1.msra.mxu0 0.0
    %355 = vmatprep.subr.mxu0 0.0
    %356 = vmatpush1.msra.mxu0 0.0
    %357 = vmatprep.subr.mxu0 0.0
    %358 = vmatpush1.msra.mxu0 0.0
    %359 = vmatprep.subr.mxu0 0.0
    %360 = vmatpush1.msra.mxu0 0.0
    %361 = vmatprep.subr.mxu0 0.0
    %362 = vmatpush1.msra.mxu0 0.0
    %363 = vmatprep.subr.mxu0 0.0
    %364 = vmatpush1.msra.mxu0 0.0
    %365 = vmatprep.subr.mxu0 0.0
    %366 = vmatpush1.msra.mxu0 0.0
    %367 = vmatprep.subr.mxu0 0.0
    %368 = vmatpush1.msra.mxu0 0.0
    %369 = vmatprep.subr.mxu0 0.0
    %370 = vmatpush1.msra.mxu0 0.0
    %371 = vmatprep.subr.mxu0 0.0
    %372 = vmatpush1.msra.mxu0 0.0
    %373 = vmatprep.subr.mxu0 0.0
    %374 = vmatpush1.msra.mxu0 0.0
    %375 = vmatprep.subr.mxu0 0.0
    %376 = vmatpush1.msra.mxu0 0.0
    %377 = vmatprep.subr.mxu0 0.0
    %378 = vmatpush1.msra.mxu0 0.0
    %379 = vmatprep.subr.mxu0 0.0
    %380 = vmatpush1.msra.mxu0 0.0
    %381 = vmatprep.subr.mxu0 0.0
    %382 = vmatpush1.msra.mxu0 0.0
    %383 = vmatprep.subr.mxu0 0.0
    %384 = vmatpush1.msra.mxu0 0.0
    %385 = vmatprep.subr.mxu0 0.0
    %386 = vmatpush1.msra.mxu0 0.0
    %387 = vmatprep.subr.mxu0 0.0
    %388 = vmatpush1.msra.mxu0 0.0
    %389 = vmatprep.subr.mxu0 0.0
    %390 = vmatpush1.msra.mxu0 0.0
    %391 = vmatprep.subr.mxu0 0.0
    %392 = vmatpush1.msra.mxu0 0.0
    %393 = vmatprep.subr.mxu0 0.0
    %394 = vmatpush1.msra.mxu0 0.0
    %395 = vmatprep.subr.mxu0 0.0
    %396 = vmatpush1.msra.mxu0 0.0
    %397 = vmatprep.subr.mxu0 0.0
    %398 = vmatpush1.msra.mxu0 0.0
    %399 = vmatprep.subr.mxu0 0.0
    %400 = vmatpush1.msra.mxu0 0.0
    %401 = vmatprep.subr.mxu0 0.0
    %402 = vmatpush1.msra.mxu0 0.0
    %403 = vmatprep.subr.mxu0 0.0
    %404 = vmatpush1.msra.mxu0 0.0
    %405 = vmatprep.subr.mxu0 0.0
    %406 = vmatpush1.msra.mxu0 0.0
    %407 = vmatprep.mubr.f32.mxu0 0.0
    %408 = vmatmul.mubr.f32.gmra.mrb[0].mxu0 %v341
    %v409 = vpop.f32.mrb[0].mxu0
    %v410 = vadd.f32 0.0, %v409
    %v411 = vpop.f32.mrb[0].mxu0
    %412 = vdwg.mxu0
    %v414 = vrot.slane %v410, 5
    %v415 = vrot.slane %v410, 6
    %v418 = vadd.f32 %v153, %v414
    %v419 = vadd.f32 %v159, %v415
    %v420 = vtanh.pop %v418
    %v421 = vtanh.pop %v419
    %v424 = vrot.slane %v420, 3
    %v425 = vrot.slane %v421, 2
    %v426 = vsel %vm168, %v425, %v424
    %v427 = vsel %vm170, %v426, 0
    %429 = vmatprep.subr.mxu0 0.0
    %430 = vmatpush1.msra.mxu0 %v44
    %431 = vmatprep.subr.mxu0 0.0
    %432 = vmatpush1.msra.mxu0 %v45
    %433 = vmatprep.subr.mxu0 0.0
    %434 = vmatpush1.msra.mxu0 %v46
    %435 = vmatprep.subr.mxu0 0.0
    %436 = vmatpush1.msra.mxu0 %v47
    %437 = vmatprep.subr.mxu0 0.0
    %438 = vmatpush1.msra.mxu0 0.0
    %439 = vmatprep.subr.mxu0 0.0
    %440 = vmatpush1.msra.mxu0 0.0
    %441 = vmatprep.subr.mxu0 0.0
    %442 = vmatpush1.msra.mxu0 0.0
    %443 = vmatprep.subr.mxu0 0.0
    %444 = vmatpush1.msra.mxu0 0.0
    %445 = vmatprep.subr.mxu0 0.0
    %446 = vmatpush1.msra.mxu0 0.0
    %447 = vmatprep.subr.mxu0 0.0
    %448 = vmatpush1.msra.mxu0 0.0
    %449 = vmatprep.subr.mxu0 0.0
    %450 = vmatpush1.msra.mxu0 0.0
    %451 = vmatprep.subr.mxu0 0.0
    %452 = vmatpush1.msra.mxu0 0.0
    %453 = vmatprep.subr.mxu0 0.0
    %454 = vmatpush1.msra.mxu0 0.0
    %455 = vmatprep.subr.mxu0 0.0
    %456 = vmatpush1.msra.mxu0 0.0
    %457 = vmatprep.subr.mxu0 0.0
    %458 = vmatpush1.msra.mxu0 0.0
    %459 = vmatprep.subr.mxu0 0.0
    %460 = vmatpush1.msra.mxu0 0.0
    %461 = vmatprep.subr.mxu0 0.0
    %462 = vmatpush1.msra.mxu0 0.0
    %463 = vmatprep.subr.mxu0 0.0
    %464 = vmatpush1.msra.mxu0 0.0
    %465 = vmatprep.subr.mxu0 0.0
    %466 = vmatpush1.msra.mxu0 0.0
    %467 = vmatprep.subr.mxu0 0.0
    %468 = vmatpush1.msra.mxu0 0.0
    %469 = vmatprep.subr.mxu0 0.0
    %470 = vmatpush1.msra.mxu0 0.0
    %471 = vmatprep.subr.mxu0 0.0
    %472 = vmatpush1.msra.mxu0 0.0
    %473 = vmatprep.subr.mxu0 0.0
    %474 = vmatpush1.msra.mxu0 0.0
    %475 = vmatprep.subr.mxu0 0.0
    %476 = vmatpush1.msra.mxu0 0.0
    %477 = vmatprep.subr.mxu0 0.0
    %478 = vmatpush1.msra.mxu0 0.0
    %479 = vmatprep.subr.mxu0 0.0
    %480 = vmatpush1.msra.mxu0 0.0
    %481 = vmatprep.subr.mxu0 0.0
    %482 = vmatpush1.msra.mxu0 0.0
    %483 = vmatprep.subr.mxu0 0.0
    %484 = vmatpush1.msra.mxu0 0.0
    %485 = vmatprep.subr.mxu0 0.0
    %486 = vmatpush1.msra.mxu0 0.0
    %487 = vmatprep.subr.mxu0 0.0
    %488 = vmatpush1.msra.mxu0 0.0
    %489 = vmatprep.subr.mxu0 0.0
    %490 = vmatpush1.msra.mxu0 0.0
    %491 = vmatprep.subr.mxu0 0.0
    %492 = vmatpush1.msra.mxu0 0.0
    %493 = vmatprep.mubr.f32.mxu0 0.0
    %494 = vmatmul.mubr.f32.gmra.mrb[0].mxu0 %v427
    %v495 = vpop.f32.mrb[0].mxu0
    %v496 = vadd.f32 0.0, %v495
    %v497 = vpop.f32.mrb[0].mxu0
    %498 = vdwg.mxu0
    %v500 = vrot.slane %v496, 4
    %v501 = vrot.slane %v496, 5
    %v504 = vadd.f32 %v153, %v500
    %v505 = vadd.f32 %v159, %v501
    %v506 = vtanh.pop %v504
    %v507 = vtanh.pop %v505
    %v510 = vrot.slane %v506, 4
    %v511 = vrot.slane %v507, 3
    %v512 = vsel %vm168, %v511, %v510
    %v513 = vsel %vm170, %v512, 0
    %515 = vmatprep.subr.mxu0 0.0
    %516 = vmatpush1.msra.mxu0 %v44
    %517 = vmatprep.subr.mxu0 0.0
    %518 = vmatpush1.msra.mxu0 %v45
    %519 = vmatprep.subr.mxu0 0.0
    %520 = vmatpush1.msra.mxu0 %v46
    %521 = vmatprep.subr.mxu0 0.0
    %522 = vmatpush1.msra.mxu0 %v47
    %523 = vmatprep.subr.mxu0 0.0
    %524 = vmatpush1.msra.mxu0 0.0
    %525 = vmatprep.subr.mxu0 0.0
    %526 = vmatpush1.msra.mxu0 0.0
    %527 = vmatprep.subr.mxu0 0.0
    %528 = vmatpush1.msra.mxu0 0.0
    %529 = vmatprep.subr.mxu0 0.0
    %530 = vmatpush1.msra.mxu0 0.0
    %531 = vmatprep.subr.mxu0 0.0
    %532 = vmatpush1.msra.mxu0 0.0
    %533 = vmatprep.subr.mxu0 0.0
    %534 = vmatpush1.msra.mxu0 0.0
    %535 = vmatprep.subr.mxu0 0.0
    %536 = vmatpush1.msra.mxu0 0.0
    %537 = vmatprep.subr.mxu0 0.0
    %538 = vmatpush1.msra.mxu0 0.0
    %539 = vmatprep.subr.mxu0 0.0
    %540 = vmatpush1.msra.mxu0 0.0
    %541 = vmatprep.subr.mxu0 0.0
    %542 = vmatpush1.msra.mxu0 0.0
    %543 = vmatprep.subr.mxu0 0.0
    %544 = vmatpush1.msra.mxu0 0.0
    %545 = vmatprep.subr.mxu0 0.0
    %546 = vmatpush1.msra.mxu0 0.0
    %547 = vmatprep.subr.mxu0 0.0
    %548 = vmatpush1.msra.mxu0 0.0
    %549 = vmatprep.subr.mxu0 0.0
    %550 = vmatpush1.msra.mxu0 0.0
    %551 = vmatprep.subr.mxu0 0.0
    %552 = vmatpush1.msra.mxu0 0.0
    %553 = vmatprep.subr.mxu0 0.0
    %554 = vmatpush1.msra.mxu0 0.0
    %555 = vmatprep.subr.mxu0 0.0
    %556 = vmatpush1.msra.mxu0 0.0
    %557 = vmatprep.subr.mxu0 0.0
    %558 = vmatpush1.msra.mxu0 0.0
    %559 = vmatprep.subr.mxu0 0.0
    %560 = vmatpush1.msra.mxu0 0.0
    %561 = vmatprep.subr.mxu0 0.0
    %562 = vmatpush1.msra.mxu0 0.0
    %563 = vmatprep.subr.mxu0 0.0
    %564 = vmatpush1.msra.mxu0 0.0
    %565 = vmatprep.subr.mxu0 0.0
    %566 = vmatpush1.msra.mxu0 0.0
    %567 = vmatprep.subr.mxu0 0.0
    %568 = vmatpush1.msra.mxu0 0.0
    %569 = vmatprep.subr.mxu0 0.0
    %570 = vmatpush1.msra.mxu0 0.0
    %571 = vmatprep.subr.mxu0 0.0
    %572 = vmatpush1.msra.mxu0 0.0
    %573 = vmatprep.subr.mxu0 0.0
    %574 = vmatpush1.msra.mxu0 0.0
    %575 = vmatprep.subr.mxu0 0.0
    %576 = vmatpush1.msra.mxu0 0.0
    %577 = vmatprep.subr.mxu0 0.0
    %578 = vmatpush1.msra.mxu0 0.0
    %579 = vmatprep.mubr.f32.mxu0 0.0
    %580 = vmatmul.mubr.f32.gmra.mrb[0].mxu0 %v513
    %v581 = vpop.f32.mrb[0].mxu0
    %v582 = vadd.f32 0.0, %v581
    %v583 = vpop.f32.mrb[0].mxu0
    %584 = vdwg.mxu0
    %v586 = vrot.slane %v582, 3
    %v587 = vrot.slane %v582, 4
    %v590 = vadd.f32 %v153, %v586
    %v591 = vadd.f32 %v159, %v587
    %v592 = vtanh.pop %v590
    %v593 = vtanh.pop %v591
    %v596 = vrot.slane %v592, 5
    %v597 = vrot.slane %v593, 4
    %v598 = vsel %vm168, %v597, %v596
    %v599 = vsel %vm170, %v598, 0
    %601 = vmatprep.subr.mxu0 0.0
    %602 = vmatpush1.msra.mxu0 %v44
    %603 = vmatprep.subr.mxu0 0.0
    %604 = vmatpush1.msra.mxu0 %v45
    %605 = vmatprep.subr.mxu0 0.0
    %606 = vmatpush1.msra.mxu0 %v46
    %607 = vmatprep.subr.mxu0 0.0
    %608 = vmatpush1.msra.mxu0 %v47
    %609 = vmatprep.subr.mxu0 0.0
    %610 = vmatpush1.msra.mxu0 0.0
    %611 = vmatprep.subr.mxu0 0.0
    %612 = vmatpush1.msra.mxu0 0.0
    %613 = vmatprep.subr.mxu0 0.0
    %614 = vmatpush1.msra.mxu0 0.0
    %615 = vmatprep.subr.mxu0 0.0
    %616 = vmatpush1.msra.mxu0 0.0
    %617 = vmatprep.subr.mxu0 0.0
    %618 = vmatpush1.msra.mxu0 0.0
    %619 = vmatprep.subr.mxu0 0.0
    %620 = vmatpush1.msra.mxu0 0.0
    %621 = vmatprep.subr.mxu0 0.0
    %622 = vmatpush1.msra.mxu0 0.0
    %623 = vmatprep.subr.mxu0 0.0
    %624 = vmatpush1.msra.mxu0 0.0
    %625 = vmatprep.subr.mxu0 0.0
    %626 = vmatpush1.msra.mxu0 0.0
    %627 = vmatprep.subr.mxu0 0.0
    %628 = vmatpush1.msra.mxu0 0.0
    %629 = vmatprep.subr.mxu0 0.0
    %630 = vmatpush1.msra.mxu0 0.0
    %631 = vmatprep.subr.mxu0 0.0
    %632 = vmatpush1.msra.mxu0 0.0
    %633 = vmatprep.subr.mxu0 0.0
    %634 = vmatpush1.msra.mxu0 0.0
    %635 = vmatprep.subr.mxu0 0.0
    %636 = vmatpush1.msra.mxu0 0.0
    %637 = vmatprep.subr.mxu0 0.0
    %638 = vmatpush1.msra.mxu0 0.0
    %639 = vmatprep.subr.mxu0 0.0
    %640 = vmatpush1.msra.mxu0 0.0
    %641 = vmatprep.subr.mxu0 0.0
    %642 = vmatpush1.msra.mxu0 0.0
    %643 = vmatprep.subr.mxu0 0.0
    %644 = vmatpush1.msra.mxu0 0.0
    %645 = vmatprep.subr.mxu0 0.0
    %646 = vmatpush1.msra.mxu0 0.0
    %647 = vmatprep.subr.mxu0 0.0
    %648 = vmatpush1.msra.mxu0 0.0
    %649 = vmatprep.subr.mxu0 0.0
    %650 = vmatpush1.msra.mxu0 0.0
    %651 = vmatprep.subr.mxu0 0.0
    %652 = vmatpush1.msra.mxu0 0.0
    %653 = vmatprep.subr.mxu0 0.0
    %654 = vmatpush1.msra.mxu0 0.0
    %655 = vmatprep.subr.mxu0 0.0
    %656 = vmatpush1.msra.mxu0 0.0
    %657 = vmatprep.subr.mxu0 0.0
    %658 = vmatpush1.msra.mxu0 0.0
    %659 = vmatprep.subr.mxu0 0.0
    %660 = vmatpush1.msra.mxu0 0.0
    %661 = vmatprep.subr.mxu0 0.0
    %662 = vmatpush1.msra.mxu0 0.0
    %663 = vmatprep.subr.mxu0 0.0
    %664 = vmatpush1.msra.mxu0 0.0
    %665 = vmatprep.mubr.f32.mxu0 0.0
    %666 = vmatmul.mubr.f32.gmra.mrb[0].mxu0 %v599
    %v667 = vpop.f32.mrb[0].mxu0
    %v668 = vadd.f32 0.0, %v667
    %v669 = vpop.f32.mrb[0].mxu0
    %670 = vdwg.mxu0
    %v672 = vrot.slane %v668, 2
    %v673 = vrot.slane %v668, 3
    %v676 = vadd.f32 %v153, %v672
    %v677 = vadd.f32 %v159, %v673
    %v678 = vtanh.pop %v676
    %v679 = vtanh.pop %v677
    %v682 = vrot.slane %v678, 6
    %v683 = vrot.slane %v679, 5
    %v684 = vsel %vm168, %v683, %v682
    %v685 = vsel %vm170, %v684, 0
    %687 = vmatprep.subr.mxu0 0.0
    %688 = vmatpush1.msra.mxu0 %v44
    %689 = vmatprep.subr.mxu0 0.0
    %690 = vmatpush1.msra.mxu0 %v45
    %691 = vmatprep.subr.mxu0 0.0
    %692 = vmatpush1.msra.mxu0 %v46
    %693 = vmatprep.subr.mxu0 0.0
    %694 = vmatpush1.msra.mxu0 %v47
    %695 = vmatprep.subr.mxu0 0.0
    %696 = vmatpush1.msra.mxu0 0.0
    %697 = vmatprep.subr.mxu0 0.0
    %698 = vmatpush1.msra.mxu0 0.0
    %699 = vmatprep.subr.mxu0 0.0
    %700 = vmatpush1.msra.mxu0 0.0
    %701 = vmatprep.subr.mxu0 0.0
    %702 = vmatpush1.msra.mxu0 0.0
    %703 = vmatprep.subr.mxu0 0.0
    %704 = vmatpush1.msra.mxu0 0.0
    %705 = vmatprep.subr.mxu0 0.0
    %706 = vmatpush1.msra.mxu0 0.0
    %707 = vmatprep.subr.mxu0 0.0
    %708 = vmatpush1.msra.mxu0 0.0
    %709 = vmatprep.subr.mxu0 0.0
    %710 = vmatpush1.msra.mxu0 0.0
    %711 = vmatprep.subr.mxu0 0.0
    %712 = vmatpush1.msra.mxu0 0.0
    %713 = vmatprep.subr.mxu0 0.0
    %714 = vmatpush1.msra.mxu0 0.0
    %715 = vmatprep.subr.mxu0 0.0
    %716 = vmatpush1.msra.mxu0 0.0
    %717 = vmatprep.subr.mxu0 0.0
    %718 = vmatpush1.msra.mxu0 0.0
    %719 = vmatprep.subr.mxu0 0.0
    %720 = vmatpush1.msra.mxu0 0.0
    %721 = vmatprep.subr.mxu0 0.0
    %722 = vmatpush1.msra.mxu0 0.0
    %723 = vmatprep.subr.mxu0 0.0
    %724 = vmatpush1.msra.mxu0 0.0
    %725 = vmatprep.subr.mxu0 0.0
    %726 = vmatpush1.msra.mxu0 0.0
    %727 = vmatprep.subr.mxu0 0.0
    %728 = vmatpush1.msra.mxu0 0.0
    %729 = vmatprep.subr.mxu0 0.0
    %730 = vmatpush1.msra.mxu0 0.0
    %731 = vmatprep.subr.mxu0 0.0
    %732 = vmatpush1.msra.mxu0 0.0
    %733 = vmatprep.subr.mxu0 0.0
    %734 = vmatpush1.msra.mxu0 0.0
    %735 = vmatprep.subr.mxu0 0.0
    %736 = vmatpush1.msra.mxu0 0.0
    %737 = vmatprep.subr.mxu0 0.0
    %738 = vmatpush1.msra.mxu0 0.0
    %739 = vmatprep.subr.mxu0 0.0
    %740 = vmatpush1.msra.mxu0 0.0
    %741 = vmatprep.subr.mxu0 0.0
    %742 = vmatpush1.msra.mxu0 0.0
    %743 = vmatprep.subr.mxu0 0.0
    %744 = vmatpush1.msra.mxu0 0.0
    %745 = vmatprep.subr.mxu0 0.0
    %746 = vmatpush1.msra.mxu0 0.0
    %747 = vmatprep.subr.mxu0 0.0
    %748 = vmatpush1.msra.mxu0 0.0
    %749 = vmatprep.subr.mxu0 0.0
    %750 = vmatpush1.msra.mxu0 0.0
    %751 = vmatprep.mubr.f32.mxu0 0.0
    %752 = vmatmul.mubr.f32.gmra.mrb[0].mxu0 %v685
    %v753 = vpop.f32.mrb[0].mxu0
    %v754 = vadd.f32 0.0, %v753
    %v755 = vpop.f32.mrb[0].mxu0
    %756 = vdwg.mxu0
    %v758 = vrot.slane %v754, 1
    %v759 = vrot.slane %v754, 2
    %v762 = vadd.f32 %v153, %v758
    %v763 = vadd.f32 %v159, %v759
    %v764 = vtanh.pop %v762
    %v765 = vtanh.pop %v763
    %vm766 = vcmask 24576
    %767 = vst.msk [vmem:[%s4] sm:$0x1] %vm766, 0.0
    %768 = vst.msk [vmem:[%s4 + $0x8] sm:$0x1] %vm766, 0.0
    %v771 = vrot.slane %v764, 7
    %v772 = vrot.slane %v765, 6
    %v773 = vsel %vm168, %v772, %v771
    %v774 = vsel %vm170, %v773, 0
    %776 = vmatprep.subr.mxu0 %v49
    %777 = vmatpush1.msra.mxu0 %v48
    %778 = vmatprep.subr.mxu0 %v52
    %779 = vmatpush1.msra.mxu0 %v51
    %780 = vmatprep.subr.mxu0 %v55
    %781 = vmatpush1.msra.mxu0 %v54
    %782 = vmatprep.subr.mxu0 %v58
    %783 = vmatpush1.msra.mxu0 %v57
    %784 = vmatprep.subr.mxu0 0.0
    %785 = vmatpush1.msra.mxu0 0.0
    %786 = vmatprep.subr.mxu0 0.0
    %787 = vmatpush1.msra.mxu0 0.0
    %788 = vmatprep.subr.mxu0 0.0
    %789 = vmatpush1.msra.mxu0 0.0
    %790 = vmatprep.subr.mxu0 0.0
    %791 = vmatpush1.msra.mxu0 0.0
    %792 = vmatprep.subr.mxu0 0.0
    %793 = vmatpush1.msra.mxu0 0.0
    %794 = vmatprep.subr.mxu0 0.0
    %795 = vmatpush1.msra.mxu0 0.0
    %796 = vmatprep.subr.mxu0 0.0
    %797 = vmatpush1.msra.mxu0 0.0
    %798 = vmatprep.subr.mxu0 0.0
    %799 = vmatpush1.msra.mxu0 0.0
    %800 = vmatprep.subr.mxu0 0.0
    %801 = vmatpush1.msra.mxu0 0.0
    %802 = vmatprep.subr.mxu0 0.0
    %803 = vmatpush1.msra.mxu0 0.0
    %804 = vmatprep.subr.mxu0 0.0
    %805 = vmatpush1.msra.mxu0 0.0
    %806 = vmatprep.subr.mxu0 0.0
    %807 = vmatpush1.msra.mxu0 0.0
    %808 = vmatprep.subr.mxu0 0.0
    %809 = vmatpush1.msra.mxu0 0.0
    %810 = vmatprep.subr.mxu0 0.0
    %811 = vmatpush1.msra.mxu0 0.0
    %812 = vmatprep.subr.mxu0 0.0
    %813 = vmatpush1.msra.mxu0 0.0
    %814 = vmatprep.subr.mxu0 0.0
    %815 = vmatpush1.msra.mxu0 0.0
    %816 = vmatprep.subr.mxu0 0.0
    %817 = vmatpush1.msra.mxu0 0.0
    %818 = vmatprep.subr.mxu0 0.0
    %819 = vmatpush1.msra.mxu0 0.0
    %820 = vmatprep.subr.mxu0 0.0
    %821 = vmatpush1.msra.mxu0 0.0
    %822 = vmatprep.subr.mxu0 0.0
    %823 = vmatpush1.msra.mxu0 0.0
    %824 = vmatprep.subr.mxu0 0.0
    %825 = vmatpush1.msra.mxu0 0.0
    %826 = vmatprep.subr.mxu0 0.0
    %827 = vmatpush1.msra.mxu0 0.0
    %828 = vmatprep.subr.mxu0 0.0
    %829 = vmatpush1.msra.mxu0 0.0
    %830 = vmatprep.subr.mxu0 0.0
    %831 = vmatpush1.msra.mxu0 0.0
    %832 = vmatprep.subr.mxu0 0.0
    %833 = vmatpush1.msra.mxu0 0.0
    %834 = vmatprep.subr.mxu0 0.0
    %835 = vmatpush1.msra.mxu0 0.0
    %836 = vmatprep.subr.mxu0 0.0
    %837 = vmatpush1.msra.mxu0 0.0
    %838 = vmatprep.subr.mxu0 0.0
    %839 = vmatpush1.msra.mxu0 0.0
    %840 = vmatprep.mubr.f32.mxu0 0.0
    %841 = vmatmul.mubr.f32.gmra.mrb[0].mxu0 %v774
    %v842 = vpop.f32.mrb[0].mxu0
    %v843 = vadd.f32 0.0, %v842
    %v844 = vpop.f32.mrb[0].mxu0
    %845 = vdwg.mxu0
    %v847 = vrot.slane %v843, 1
    %v850 = vadd.f32 %v155, %v843
    %v851 = vadd.f32 %v161, %v847
    %v852 = vtanh.pop %v850
    %v853 = vtanh.pop %v851
    %v856 = vrot.slane %v853, 7
    %v857 = vsel %vm168, %v856, %v852
    %v858 = vsel %vm170, %v857, 0
    %860 = vmatprep.subr.mxu0 %v49
    %861 = vmatpush1.msra.mxu0 %v48
    %862 = vmatprep.subr.mxu0 %v52
    %863 = vmatpush1.msra.mxu0 %v51
    %864 = vmatprep.subr.mxu0 %v55
    %865 = vmatpush1.msra.mxu0 %v54
    %866 = vmatprep.subr.mxu0 %v58
    %867 = vmatpush1.msra.mxu0 %v57
    %868 = vmatprep.subr.mxu0 0.0
    %869 = vmatpush1.msra.mxu0 0.0
    %870 = vmatprep.subr.mxu0 0.0
    %871 = vmatpush1.msra.mxu0 0.0
    %872 = vmatprep.subr.mxu0 0.0
    %873 = vmatpush1.msra.mxu0 0.0
    %874 = vmatprep.subr.mxu0 0.0
    %875 = vmatpush1.msra.mxu0 0.0
    %876 = vmatprep.subr.mxu0 0.0
    %877 = vmatpush1.msra.mxu0 0.0
    %878 = vmatprep.subr.mxu0 0.0
    %879 = vmatpush1.msra.mxu0 0.0
    %880 = vmatprep.subr.mxu0 0.0
    %881 = vmatpush1.msra.mxu0 0.0
    %882 = vmatprep.subr.mxu0 0.0
    %883 = vmatpush1.msra.mxu0 0.0
    %884 = vmatprep.subr.mxu0 0.0
    %885 = vmatpush1.msra.mxu0 0.0
    %886 = vmatprep.subr.mxu0 0.0
    %887 = vmatpush1.msra.mxu0 0.0
    %888 = vmatprep.subr.mxu0 0.0
    %889 = vmatpush1.msra.mxu0 0.0
    %890 = vmatprep.subr.mxu0 0.0
    %891 = vmatpush1.msra.mxu0 0.0
    %892 = vmatprep.subr.mxu0 0.0
    %893 = vmatpush1.msra.mxu0 0.0
    %894 = vmatprep.subr.mxu0 0.0
    %895 = vmatpush1.msra.mxu0 0.0
    %896 = vmatprep.subr.mxu0 0.0
    %897 = vmatpush1.msra.mxu0 0.0
    %898 = vmatprep.subr.mxu0 0.0
    %899 = vmatpush1.msra.mxu0 0.0
    %900 = vmatprep.subr.mxu0 0.0
    %901 = vmatpush1.msra.mxu0 0.0
    %902 = vmatprep.subr.mxu0 0.0
    %903 = vmatpush1.msra.mxu0 0.0
    %904 = vmatprep.subr.mxu0 0.0
    %905 = vmatpush1.msra.mxu0 0.0
    %906 = vmatprep.subr.mxu0 0.0
    %907 = vmatpush1.msra.mxu0 0.0
    %908 = vmatprep.subr.mxu0 0.0
    %909 = vmatpush1.msra.mxu0 0.0
    %910 = vmatprep.subr.mxu0 0.0
    %911 = vmatpush1.msra.mxu0 0.0
    %912 = vmatprep.subr.mxu0 0.0
    %913 = vmatpush1.msra.mxu0 0.0
    %914 = vmatprep.subr.mxu0 0.0
    %915 = vmatpush1.msra.mxu0 0.0
    %916 = vmatprep.subr.mxu0 0.0
    %917 = vmatpush1.msra.mxu0 0.0
    %918 = vmatprep.subr.mxu0 0.0
    %919 = vmatpush1.msra.mxu0 0.0
    %920 = vmatprep.subr.mxu0 0.0
    %921 = vmatpush1.msra.mxu0 0.0
    %922 = vmatprep.subr.mxu0 0.0
    %923 = vmatpush1.msra.mxu0 0.0
    %924 = vmatprep.mubr.f32.mxu0 0.0
    %925 = vmatmul.mubr.f32.gmra.mrb[0].mxu0 %v858
    %v926 = vpop.f32.mrb[0].mxu0
    %v927 = vadd.f32 0.0, %v926
    %v928 = vpop.f32.mrb[0].mxu0
    %v929 = vadd.f32 0.0, %v928
    %930 = vdwg.mxu0
    %931 = vmatprep.subr.mxu0 0.0
    %932 = vmatpush1.msra.mxu0 %v50
    %933 = vmatprep.subr.mxu0 0.0
    %934 = vmatpush1.msra.mxu0 %v53
    %935 = vmatprep.subr.mxu0 0.0
    %936 = vmatpush1.msra.mxu0 %v56
    %937 = vmatprep.subr.mxu0 0.0
    %938 = vmatpush1.msra.mxu0 %v59
    %939 = vmatprep.subr.mxu0 0.0
    %940 = vmatpush1.msra.mxu0 0.0
    %941 = vmatprep.subr.mxu0 0.0
    %942 = vmatpush1.msra.mxu0 0.0
    %943 = vmatprep.subr.mxu0 0.0
    %944 = vmatpush1.msra.mxu0 0.0
    %945 = vmatprep.subr.mxu0 0.0
    %946 = vmatpush1.msra.mxu0 0.0
    %947 = vmatprep.subr.mxu0 0.0
    %948 = vmatpush1.msra.mxu0 0.0
    %949 = vmatprep.subr.mxu0 0.0
    %950 = vmatpush1.msra.mxu0 0.0
    %951 = vmatprep.subr.mxu0 0.0
    %952 = vmatpush1.msra.mxu0 0.0
    %953 = vmatprep.subr.mxu0 0.0
    %954 = vmatpush1.msra.mxu0 0.0
    %955 = vmatprep.subr.mxu0 0.0
    %956 = vmatpush1.msra.mxu0 0.0
    %957 = vmatprep.subr.mxu0 0.0
    %958 = vmatpush1.msra.mxu0 0.0
    %959 = vmatprep.subr.mxu0 0.0
    %960 = vmatpush1.msra.mxu0 0.0
    %961 = vmatprep.subr.mxu0 0.0
    %962 = vmatpush1.msra.mxu0 0.0
    %963 = vmatprep.subr.mxu0 0.0
    %964 = vmatpush1.msra.mxu0 0.0
    %965 = vmatprep.subr.mxu0 0.0
    %966 = vmatpush1.msra.mxu0 0.0
    %967 = vmatprep.subr.mxu0 0.0
    %968 = vmatpush1.msra.mxu0 0.0
    %969 = vmatprep.subr.mxu0 0.0
    %970 = vmatpush1.msra.mxu0 0.0
    %971 = vmatprep.subr.mxu0 0.0
    %972 = vmatpush1.msra.mxu0 0.0
    %973 = vmatprep.subr.mxu0 0.0
    %974 = vmatpush1.msra.mxu0 0.0
    %975 = vmatprep.subr.mxu0 0.0
    %976 = vmatpush1.msra.mxu0 0.0
    %977 = vmatprep.subr.mxu0 0.0
    %978 = vmatpush1.msra.mxu0 0.0
    %979 = vmatprep.subr.mxu0 0.0
    %980 = vmatpush1.msra.mxu0 0.0
    %981 = vmatprep.subr.mxu0 0.0
    %982 = vmatpush1.msra.mxu0 0.0
    %983 = vmatprep.subr.mxu0 0.0
    %984 = vmatpush1.msra.mxu0 0.0
    %985 = vmatprep.subr.mxu0 0.0
    %986 = vmatpush1.msra.mxu0 0.0
    %987 = vmatprep.subr.mxu0 0.0
    %988 = vmatpush1.msra.mxu0 0.0
    %989 = vmatprep.subr.mxu0 0.0
    %990 = vmatpush1.msra.mxu0 0.0
    %991 = vmatprep.subr.mxu0 0.0
    %992 = vmatpush1.msra.mxu0 0.0
    %993 = vmatprep.subr.mxu0 0.0
    %994 = vmatpush1.msra.mxu0 0.0
    %995 = vmatprep.mubr.f32.mxu0 0.0
    %996 = vmatmul.mubr.f32.gmra.mrb[0].mxu0 %v858
    %v997 = vpop.f32.mrb[0].mxu0
    %v998 = vadd.f32 0.0, %v997
    %v999 = vpop.f32.mrb[0].mxu0
    %1000 = vdwg.mxu0
    %v1001 = vadd.f32 %v929, %v64
    %v1004 = vunpack.c.l.s4 1966171168
    %v1005 = vunpack.c.0.s8 %v1004
    %v1006 = vlaneseq
    %v1007 = vshrl.u32 %v1006, 7
    %v1008 = vsub.s32 %v1005, %v1007
    %v1009 = vrot.slane %v1001, %v1008
    %v1010 = vcombine.high %v1009, %v1009
    %v1012 = vunpack.c.l.s4 1966171168
    %v1013 = vunpack.c.0.s8 %v1012
    %v1014 = vlaneseq
    %v1015 = vshrl.u32 %v1014, 7
    %v1016 = vsub.s32 %v1013, %v1015
    %v1017 = vrot.slane %v1009, %v1016
    %v1019 = vunpack.c.l.s4 1966171168
    %v1020 = vunpack.c.0.s8 %v1019
    %v1021 = vlaneseq
    %v1022 = vshrl.u32 %v1021, 7
    %v1023 = vsub.s32 %v1020, %v1022
    %v1024 = vrot.slane %v1010, %v1023
    %1027 = vst.msk [vmem:[%s4 + $0x1] sm:$0x1] %vm766, %v1017
    %1028 = vst.msk [vmem:[%s4 + $0x9] sm:$0x1] %vm766, %v1024
    %v1029 = vadd.f32 %v998, %v65
    %s1030 = sld [smem:[#allocation2 + $0x1]]
    %p1031 = scmp.gt.s32.totalorder %s1030, 0
    %s1032 = scalar_select %p1031, 1, 0
    %v1033 = vstv %s1032
    %vm1034 = vcmp.eq.s32.totalorder %v1033, 1
    %v1036 = vrot.slane %v1029, 7
    %v1039 = vsel %vm1034, %v155, %v1036
    %v1040 = vsel %vm1034, %v161, %v1029
    %v1042 = vrot.slane %v927, 7
    %v1045 = vadd.f32 %v1039, %v1042
    %v1046 = vadd.f32 %v1040, %v927
    %v1047 = vtanh.pop %v1045
    %v1048 = vtanh.pop %v1046
    %v1051 = vrot.slane %v1047, 1
    %v1052 = vsel %vm168, %v1048, %v1051
    %v1053 = vsel %vm170, %v1052, 0
    %1055 = vmatprep.subr.mxu0 %v49
    %1056 = vmatpush1.msra.mxu0 %v48
    %1057 = vmatprep.subr.mxu0 %v52
    %1058 = vmatpush1.msra.mxu0 %v51
    %1059 = vmatprep.subr.mxu0 %v55
    %1060 = vmatpush1.msra.mxu0 %v54
    %1061 = vmatprep.subr.mxu0 %v58
    %1062 = vmatpush1.msra.mxu0 %v57
    %1063 = vmatprep.subr.mxu0 0.0
    %1064 = vmatpush1.msra.mxu0 0.0
    %1065 = vmatprep.subr.mxu0 0.0
    %1066 = vmatpush1.msra.mxu0 0.0
    %1067 = vmatprep.subr.mxu0 0.0
    %1068 = vmatpush1.msra.mxu0 0.0
    %1069 = vmatprep.subr.mxu0 0.0
    %1070 = vmatpush1.msra.mxu0 0.0
    %1071 = vmatprep.subr.mxu0 0.0
    %1072 = vmatpush1.msra.mxu0 0.0
    %1073 = vmatprep.subr.mxu0 0.0
    %1074 = vmatpush1.msra.mxu0 0.0
    %1075 = vmatprep.subr.mxu0 0.0
    %1076 = vmatpush1.msra.mxu0 0.0
    %1077 = vmatprep.subr.mxu0 0.0
    %1078 = vmatpush1.msra.mxu0 0.0
    %1079 = vmatprep.subr.mxu0 0.0
    %1080 = vmatpush1.msra.mxu0 0.0
    %1081 = vmatprep.subr.mxu0 0.0
    %1082 = vmatpush1.msra.mxu0 0.0
    %1083 = vmatprep.subr.mxu0 0.0
    %1084 = vmatpush1.msra.mxu0 0.0
    %1085 = vmatprep.subr.mxu0 0.0
    %1086 = vmatpush1.msra.mxu0 0.0
    %1087 = vmatprep.subr.mxu0 0.0
    %1088 = vmatpush1.msra.mxu0 0.0
    %1089 = vmatprep.subr.mxu0 0.0
    %1090 = vmatpush1.msra.mxu0 0.0
    %1091 = vmatprep.subr.mxu0 0.0
    %1092 = vmatpush1.msra.mxu0 0.0
    %1093 = vmatprep.subr.mxu0 0.0
    %1094 = vmatpush1.msra.mxu0 0.0
    %1095 = vmatprep.subr.mxu0 0.0
    %1096 = vmatpush1.msra.mxu0 0.0
    %1097 = vmatprep.subr.mxu0 0.0
    %1098 = vmatpush1.msra.mxu0 0.0
    %1099 = vmatprep.subr.mxu0 0.0
    %1100 = vmatpush1.msra.mxu0 0.0
    %1101 = vmatprep.subr.mxu0 0.0
    %1102 = vmatpush1.msra.mxu0 0.0
    %1103 = vmatprep.subr.mxu0 0.0
    %1104 = vmatpush1.msra.mxu0 0.0
    %1105 = vmatprep.subr.mxu0 0.0
    %1106 = vmatpush1.msra.mxu0 0.0
    %1107 = vmatprep.subr.mxu0 0.0
    %1108 = vmatpush1.msra.mxu0 0.0
    %1109 = vmatprep.subr.mxu0 0.0
    %1110 = vmatpush1.msra.mxu0 0.0
    %1111 = vmatprep.subr.mxu0 0.0
    %1112 = vmatpush1.msra.mxu0 0.0
    %1113 = vmatprep.subr.mxu0 0.0
    %1114 = vmatpush1.msra.mxu0 0.0
    %1115 = vmatprep.subr.mxu0 0.0
    %1116 = vmatpush1.msra.mxu0 0.0
    %1117 = vmatprep.subr.mxu0 0.0
    %1118 = vmatpush1.msra.mxu0 0.0
    %1119 = vmatprep.mubr.f32.mxu0 0.0
    %1120 = vmatmul.mubr.f32.gmra.mrb[0].mxu0 %v1053
    %v1121 = vpop.f32.mrb[0].mxu0
    %v1122 = vadd.f32 0.0, %v1121
    %v1123 = vpop.f32.mrb[0].mxu0
    %v1124 = vadd.f32 0.0, %v1123
    %1125 = vdwg.mxu0
    %1126 = vmatprep.subr.mxu0 0.0
    %1127 = vmatpush1.msra.mxu0 %v50
    %1128 = vmatprep.subr.mxu0 0.0
    %1129 = vmatpush1.msra.mxu0 %v53
    %1130 = vmatprep.subr.mxu0 0.0
    %1131 = vmatpush1.msra.mxu0 %v56
    %1132 = vmatprep.subr.mxu0 0.0
    %1133 = vmatpush1.msra.mxu0 %v59
    %1134 = vmatprep.subr.mxu0 0.0
    %1135 = vmatpush1.msra.mxu0 0.0
    %1136 = vmatprep.subr.mxu0 0.0
    %1137 = vmatpush1.msra.mxu0 0.0
    %1138 = vmatprep.subr.mxu0 0.0
    %1139 = vmatpush1.msra.mxu0 0.0
    %1140 = vmatprep.subr.mxu0 0.0
    %1141 = vmatpush1.msra.mxu0 0.0
    %1142 = vmatprep.subr.mxu0 0.0
    %1143 = vmatpush1.msra.mxu0 0.0
    %1144 = vmatprep.subr.mxu0 0.0
    %1145 = vmatpush1.msra.mxu0 0.0
    %1146 = vmatprep.subr.mxu0 0.0
    %1147 = vmatpush1.msra.mxu0 0.0
    %1148 = vmatprep.subr.mxu0 0.0
    %1149 = vmatpush1.msra.mxu0 0.0
    %1150 = vmatprep.subr.mxu0 0.0
    %1151 = vmatpush1.msra.mxu0 0.0
    %1152 = vmatprep.subr.mxu0 0.0
    %1153 = vmatpush1.msra.mxu0 0.0
    %1154 = vmatprep.subr.mxu0 0.0
    %1155 = vmatpush1.msra.mxu0 0.0
    %1156 = vmatprep.subr.mxu0 0.0
    %1157 = vmatpush1.msra.mxu0 0.0
    %1158 = vmatprep.subr.mxu0 0.0
    %1159 = vmatpush1.msra.mxu0 0.0
    %1160 = vmatprep.subr.mxu0 0.0
    %1161 = vmatpush1.msra.mxu0 0.0
    %1162 = vmatprep.subr.mxu0 0.0
    %1163 = vmatpush1.msra.mxu0 0.0
    %1164 = vmatprep.subr.mxu0 0.0
    %1165 = vmatpush1.msra.mxu0 0.0
    %1166 = vmatprep.subr.mxu0 0.0
    %1167 = vmatpush1.msra.mxu0 0.0
    %1168 = vmatprep.subr.mxu0 0.0
    %1169 = vmatpush1.msra.mxu0 0.0
    %1170 = vmatprep.subr.mxu0 0.0
    %1171 = vmatpush1.msra.mxu0 0.0
    %1172 = vmatprep.subr.mxu0 0.0
    %1173 = vmatpush1.msra.mxu0 0.0
    %1174 = vmatprep.subr.mxu0 0.0
    %1175 = vmatpush1.msra.mxu0 0.0
    %1176 = vmatprep.subr.mxu0 0.0
    %1177 = vmatpush1.msra.mxu0 0.0
    %1178 = vmatprep.subr.mxu0 0.0
    %1179 = vmatpush1.msra.mxu0 0.0
    %1180 = vmatprep.subr.mxu0 0.0
    %1181 = vmatpush1.msra.mxu0 0.0
    %1182 = vmatprep.subr.mxu0 0.0
    %1183 = vmatpush1.msra.mxu0 0.0
    %1184 = vmatprep.subr.mxu0 0.0
    %1185 = vmatpush1.msra.mxu0 0.0
    %1186 = vmatprep.subr.mxu0 0.0
    %1187 = vmatpush1.msra.mxu0 0.0
    %1188 = vmatprep.subr.mxu0 0.0
    %1189 = vmatpush1.msra.mxu0 0.0
    %1190 = vmatprep.mubr.f32.mxu0 0.0
    %1191 = vmatmul.mubr.f32.gmra.mrb[0].mxu0 %v1053
    %v1192 = vpop.f32.mrb[0].mxu0
    %v1193 = vadd.f32 0.0, %v1192
    %v1194 = vpop.f32.mrb[0].mxu0
    %1195 = vdwg.mxu0
    %v1196 = vadd.f32 %v1124, %v64
    %v1199 = vunpack.c.l.s4 1966171168
    %v1200 = vunpack.c.0.s8 %v1199
    %v1201 = vlaneseq
    %v1202 = vshrl.u32 %v1201, 7
    %v1203 = vsub.s32 %v1200, %v1202
    %v1204 = vrot.slane %v1196, %v1203
    %v1205 = vcombine.high %v1204, %v1204
    %v1207 = vunpack.c.l.s4 1966171168
    %v1208 = vunpack.c.0.s8 %v1207
    %v1209 = vlaneseq
    %v1210 = vshrl.u32 %v1209, 7
    %v1211 = vsub.s32 %v1208, %v1210
    %v1212 = vrot.slane %v1204, %v1211
    %v1214 = vunpack.c.l.s4 1966171168
    %v1215 = vunpack.c.0.s8 %v1214
    %v1216 = vlaneseq
    %v1217 = vshrl.u32 %v1216, 7
    %v1218 = vsub.s32 %v1215, %v1217
    %v1219 = vrot.slane %v1205, %v1218
    %1222 = vst.msk [vmem:[%s4 + $0x2] sm:$0x1] %vm766, %v1212
    %1223 = vst.msk [vmem:[%s4 + $0xa] sm:$0x1] %vm766, %v1219
    %v1224 = vadd.f32 %v1193, %v65
    %s1225 = sld [smem:[#allocation2 + $0x2]]
    %p1226 = scmp.gt.s32.totalorder %s1225, 0
    %s1227 = scalar_select %p1226, 1, 0
    %v1228 = vstv %s1227
    %vm1229 = vcmp.eq.s32.totalorder %v1228, 1
    %v1231 = vrot.slane %v1224, 6
    %v1232 = vrot.slane %v1224, 7
    %v1235 = vsel %vm1229, %v155, %v1231
    %v1236 = vsel %vm1229, %v161, %v1232
    %v1238 = vrot.slane %v1122, 6
    %v1239 = vrot.slane %v1122, 7
    %v1242 = vadd.f32 %v1235, %v1238
    %v1243 = vadd.f32 %v1236, %v1239
    %v1244 = vtanh.pop %v1242
    %v1245 = vtanh.pop %v1243
    %v1248 = vrot.slane %v1244, 2
    %v1249 = vrot.slane %v1245, 1
    %v1250 = vsel %vm168, %v1249, %v1248
    %v1251 = vsel %vm170, %v1250, 0
    %1253 = vmatprep.subr.mxu0 %v49
    %1254 = vmatpush1.msra.mxu0 %v48
    %1255 = vmatprep.subr.mxu0 %v52
    %1256 = vmatpush1.msra.mxu0 %v51
    %1257 = vmatprep.subr.mxu0 %v55
    %1258 = vmatpush1.msra.mxu0 %v54
    %1259 = vmatprep.subr.mxu0 %v58
    %1260 = vmatpush1.msra.mxu0 %v57
    %1261 = vmatprep.subr.mxu0 0.0
    %1262 = vmatpush1.msra.mxu0 0.0
    %1263 = vmatprep.subr.mxu0 0.0
    %1264 = vmatpush1.msra.mxu0 0.0
    %1265 = vmatprep.subr.mxu0 0.0
    %1266 = vmatpush1.msra.mxu0 0.0
    %1267 = vmatprep.subr.mxu0 0.0
    %1268 = vmatpush1.msra.mxu0 0.0
    %1269 = vmatprep.subr.mxu0 0.0
    %1270 = vmatpush1.msra.mxu0 0.0
    %1271 = vmatprep.subr.mxu0 0.0
    %1272 = vmatpush1.msra.mxu0 0.0
    %1273 = vmatprep.subr.mxu0 0.0
    %1274 = vmatpush1.msra.mxu0 0.0
    %1275 = vmatprep.subr.mxu0 0.0
    %1276 = vmatpush1.msra.mxu0 0.0
    %1277 = vmatprep.subr.mxu0 0.0
    %1278 = vmatpush1.msra.mxu0 0.0
    %1279 = vmatprep.subr.mxu0 0.0
    %1280 = vmatpush1.msra.mxu0 0.0
    %1281 = vmatprep.subr.mxu0 0.0
    %1282 = vmatpush1.msra.mxu0 0.0
    %1283 = vmatprep.subr.mxu0 0.0
    %1284 = vmatpush1.msra.mxu0 0.0
    %1285 = vmatprep.subr.mxu0 0.0
    %1286 = vmatpush1.msra.mxu0 0.0
    %1287 = vmatprep.subr.mxu0 0.0
    %1288 = vmatpush1.msra.mxu0 0.0
    %1289 = vmatprep.subr.mxu0 0.0
    %1290 = vmatpush1.msra.mxu0 0.0
    %1291 = vmatprep.subr.mxu0 0.0
    %1292 = vmatpush1.msra.mxu0 0.0
    %1293 = vmatprep.subr.mxu0 0.0
    %1294 = vmatpush1.msra.mxu0 0.0
    %1295 = vmatprep.subr.mxu0 0.0
    %1296 = vmatpush1.msra.mxu0 0.0
    %1297 = vmatprep.subr.mxu0 0.0
    %1298 = vmatpush1.msra.mxu0 0.0
    %1299 = vmatprep.subr.mxu0 0.0
    %1300 = vmatpush1.msra.mxu0 0.0
    %1301 = vmatprep.subr.mxu0 0.0
    %1302 = vmatpush1.msra.mxu0 0.0
    %1303 = vmatprep.subr.mxu0 0.0
    %1304 = vmatpush1.msra.mxu0 0.0
    %1305 = vmatprep.subr.mxu0 0.0
    %1306 = vmatpush1.msra.mxu0 0.0
    %1307 = vmatprep.subr.mxu0 0.0
    %1308 = vmatpush1.msra.mxu0 0.0
    %1309 = vmatprep.subr.mxu0 0.0
    %1310 = vmatpush1.msra.mxu0 0.0
    %1311 = vmatprep.subr.mxu0 0.0
    %1312 = vmatpush1.msra.mxu0 0.0
    %1313 = vmatprep.subr.mxu0 0.0
    %1314 = vmatpush1.msra.mxu0 0.0
    %1315 = vmatprep.subr.mxu0 0.0
    %1316 = vmatpush1.msra.mxu0 0.0
    %1317 = vmatprep.mubr.f32.mxu0 0.0
    %1318 = vmatmul.mubr.f32.gmra.mrb[0].mxu0 %v1251
    %v1319 = vpop.f32.mrb[0].mxu0
    %v1320 = vadd.f32 0.0, %v1319
    %v1321 = vpop.f32.mrb[0].mxu0
    %v1322 = vadd.f32 0.0, %v1321
    %1323 = vdwg.mxu0
    %1324 = vmatprep.subr.mxu0 0.0
    %1325 = vmatpush1.msra.mxu0 %v50
    %1326 = vmatprep.subr.mxu0 0.0
    %1327 = vmatpush1.msra.mxu0 %v53
    %1328 = vmatprep.subr.mxu0 0.0
    %1329 = vmatpush1.msra.mxu0 %v56
    %1330 = vmatprep.subr.mxu0 0.0
    %1331 = vmatpush1.msra.mxu0 %v59
    %1332 = vmatprep.subr.mxu0 0.0
    %1333 = vmatpush1.msra.mxu0 0.0
    %1334 = vmatprep.subr.mxu0 0.0
    %1335 = vmatpush1.msra.mxu0 0.0
    %1336 = vmatprep.subr.mxu0 0.0
    %1337 = vmatpush1.msra.mxu0 0.0
    %1338 = vmatprep.subr.mxu0 0.0
    %1339 = vmatpush1.msra.mxu0 0.0
    %1340 = vmatprep.subr.mxu0 0.0
    %1341 = vmatpush1.msra.mxu0 0.0
    %1342 = vmatprep.subr.mxu0 0.0
    %1343 = vmatpush1.msra.mxu0 0.0
    %1344 = vmatprep.subr.mxu0 0.0
    %1345 = vmatpush1.msra.mxu0 0.0
    %1346 = vmatprep.subr.mxu0 0.0
    %1347 = vmatpush1.msra.mxu0 0.0
    %1348 = vmatprep.subr.mxu0 0.0
    %1349 = vmatpush1.msra.mxu0 0.0
    %1350 = vmatprep.subr.mxu0 0.0
    %1351 = vmatpush1.msra.mxu0 0.0
    %1352 = vmatprep.subr.mxu0 0.0
    %1353 = vmatpush1.msra.mxu0 0.0
    %1354 = vmatprep.subr.mxu0 0.0
    %1355 = vmatpush1.msra.mxu0 0.0
    %1356 = vmatprep.subr.mxu0 0.0
    %1357 = vmatpush1.msra.mxu0 0.0
    %1358 = vmatprep.subr.mxu0 0.0
    %1359 = vmatpush1.msra.mxu0 0.0
    %1360 = vmatprep.subr.mxu0 0.0
    %1361 = vmatpush1.msra.mxu0 0.0
    %1362 = vmatprep.subr.mxu0 0.0
    %1363 = vmatpush1.msra.mxu0 0.0
    %1364 = vmatprep.subr.mxu0 0.0
    %1365 = vmatpush1.msra.mxu0 0.0
    %1366 = vmatprep.subr.mxu0 0.0
    %1367 = vmatpush1.msra.mxu0 0.0
    %1368 = vmatprep.subr.mxu0 0.0
    %1369 = vmatpush1.msra.mxu0 0.0
    %1370 = vmatprep.subr.mxu0 0.0
    %1371 = vmatpush1.msra.mxu0 0.0
    %1372 = vmatprep.subr.mxu0 0.0
    %1373 = vmatpush1.msra.mxu0 0.0
    %1374 = vmatprep.subr.mxu0 0.0
    %1375 = vmatpush1.msra.mxu0 0.0
    %1376 = vmatprep.subr.mxu0 0.0
    %1377 = vmatpush1.msra.mxu0 0.0
    %1378 = vmatprep.subr.mxu0 0.0
    %1379 = vmatpush1.msra.mxu0 0.0
    %1380 = vmatprep.subr.mxu0 0.0
    %1381 = vmatpush1.msra.mxu0 0.0
    %1382 = vmatprep.subr.mxu0 0.0
    %1383 = vmatpush1.msra.mxu0 0.0
    %1384 = vmatprep.subr.mxu0 0.0
    %1385 = vmatpush1.msra.mxu0 0.0
    %1386 = vmatprep.subr.mxu0 0.0
    %1387 = vmatpush1.msra.mxu0 0.0
    %1388 = vmatprep.mubr.f32.mxu0 0.0
    %1389 = vmatmul.mubr.f32.gmra.mrb[0].mxu0 %v1251
    %v1390 = vpop.f32.mrb[0].mxu0
    %v1391 = vadd.f32 0.0, %v1390
    %v1392 = vpop.f32.mrb[0].mxu0
    %1393 = vdwg.mxu0
    %v1394 = vadd.f32 %v1322, %v64
    %v1397 = vunpack.c.l.s4 1966171168
    %v1398 = vunpack.c.0.s8 %v1397
    %v1399 = vlaneseq
    %v1400 = vshrl.u32 %v1399, 7
    %v1401 = vsub.s32 %v1398, %v1400
    %v1402 = vrot.slane %v1394, %v1401
    %v1403 = vcombine.high %v1402, %v1402
    %v1405 = vunpack.c.l.s4 1966171168
    %v1406 = vunpack.c.0.s8 %v1405
    %v1407 = vlaneseq
    %v1408 = vshrl.u32 %v1407, 7
    %v1409 = vsub.s32 %v1406, %v1408
    %v1410 = vrot.slane %v1402, %v1409
    %v1412 = vunpack.c.l.s4 1966171168
    %v1413 = vunpack.c.0.s8 %v1412
    %v1414 = vlaneseq
    %v1415 = vshrl.u32 %v1414, 7
    %v1416 = vsub.s32 %v1413, %v1415
    %v1417 = vrot.slane %v1403, %v1416
    %1420 = vst.msk [vmem:[%s4 + $0x3] sm:$0x1] %vm766, %v1410
    %1421 = vst.msk [vmem:[%s4 + $0xb] sm:$0x1] %vm766, %v1417
    %v1422 = vadd.f32 %v1391, %v65
    %s1423 = sld [smem:[#allocation2 + $0x3]]
    %p1424 = scmp.gt.s32.totalorder %s1423, 0
    %s1425 = scalar_select %p1424, 1, 0
    %v1426 = vstv %s1425
    %vm1427 = vcmp.eq.s32.totalorder %v1426, 1
    %v1429 = vrot.slane %v1422, 5
    %v1430 = vrot.slane %v1422, 6
    %v1433 = vsel %vm1427, %v155, %v1429
    %v1434 = vsel %vm1427, %v161, %v1430
    %v1436 = vrot.slane %v1320, 5
    %v1437 = vrot.slane %v1320, 6
    %v1440 = vadd.f32 %v1433, %v1436
    %v1441 = vadd.f32 %v1434, %v1437
    %v1442 = vtanh.pop %v1440
    %v1443 = vtanh.pop %v1441
    %v1446 = vrot.slane %v1442, 3
    %v1447 = vrot.slane %v1443, 2
    %v1448 = vsel %vm168, %v1447, %v1446
    %v1449 = vsel %vm170, %v1448, 0
    %1451 = vmatprep.subr.mxu0 %v49
    %1452 = vmatpush1.msra.mxu0 %v48
    %1453 = vmatprep.subr.mxu0 %v52
    %1454 = vmatpush1.msra.mxu0 %v51
    %1455 = vmatprep.subr.mxu0 %v55
    %1456 = vmatpush1.msra.mxu0 %v54
    %1457 = vmatprep.subr.mxu0 %v58
    %1458 = vmatpush1.msra.mxu0 %v57
    %1459 = vmatprep.subr.mxu0 0.0
    %1460 = vmatpush1.msra.mxu0 0.0
    %1461 = vmatprep.subr.mxu0 0.0
    %1462 = vmatpush1.msra.mxu0 0.0
    %1463 = vmatprep.subr.mxu0 0.0
    %1464 = vmatpush1.msra.mxu0 0.0
    %1465 = vmatprep.subr.mxu0 0.0
    %1466 = vmatpush1.msra.mxu0 0.0
    %1467 = vmatprep.subr.mxu0 0.0
    %1468 = vmatpush1.msra.mxu0 0.0
    %1469 = vmatprep.subr.mxu0 0.0
    %1470 = vmatpush1.msra.mxu0 0.0
    %1471 = vmatprep.subr.mxu0 0.0
    %1472 = vmatpush1.msra.mxu0 0.0
    %1473 = vmatprep.subr.mxu0 0.0
    %1474 = vmatpush1.msra.mxu0 0.0
    %1475 = vmatprep.subr.mxu0 0.0
    %1476 = vmatpush1.msra.mxu0 0.0
    %1477 = vmatprep.subr.mxu0 0.0
    %1478 = vmatpush1.msra.mxu0 0.0
    %1479 = vmatprep.subr.mxu0 0.0
    %1480 = vmatpush1.msra.mxu0 0.0
    %1481 = vmatprep.subr.mxu0 0.0
    %1482 = vmatpush1.msra.mxu0 0.0
    %1483 = vmatprep.subr.mxu0 0.0
    %1484 = vmatpush1.msra.mxu0 0.0
    %1485 = vmatprep.subr.mxu0 0.0
    %1486 = vmatpush1.msra.mxu0 0.0
    %1487 = vmatprep.subr.mxu0 0.0
    %1488 = vmatpush1.msra.mxu0 0.0
    %1489 = vmatprep.subr.mxu0 0.0
    %1490 = vmatpush1.msra.mxu0 0.0
    %1491 = vmatprep.subr.mxu0 0.0
    %1492 = vmatpush1.msra.mxu0 0.0
    %1493 = vmatprep.subr.mxu0 0.0
    %1494 = vmatpush1.msra.mxu0 0.0
    %1495 = vmatprep.subr.mxu0 0.0
    %1496 = vmatpush1.msra.mxu0 0.0
    %1497 = vmatprep.subr.mxu0 0.0
    %1498 = vmatpush1.msra.mxu0 0.0
    %1499 = vmatprep.subr.mxu0 0.0
    %1500 = vmatpush1.msra.mxu0 0.0
    %1501 = vmatprep.subr.mxu0 0.0
    %1502 = vmatpush1.msra.mxu0 0.0
    %1503 = vmatprep.subr.mxu0 0.0
    %1504 = vmatpush1.msra.mxu0 0.0
    %1505 = vmatprep.subr.mxu0 0.0
    %1506 = vmatpush1.msra.mxu0 0.0
    %1507 = vmatprep.subr.mxu0 0.0
    %1508 = vmatpush1.msra.mxu0 0.0
    %1509 = vmatprep.subr.mxu0 0.0
    %1510 = vmatpush1.msra.mxu0 0.0
    %1511 = vmatprep.subr.mxu0 0.0
    %1512 = vmatpush1.msra.mxu0 0.0
    %1513 = vmatprep.subr.mxu0 0.0
    %1514 = vmatpush1.msra.mxu0 0.0
    %1515 = vmatprep.mubr.f32.mxu0 0.0
    %1516 = vmatmul.mubr.f32.gmra.mrb[0].mxu0 %v1449
    %v1517 = vpop.f32.mrb[0].mxu0
    %v1518 = vadd.f32 0.0, %v1517
    %v1519 = vpop.f32.mrb[0].mxu0
    %v1520 = vadd.f32 0.0, %v1519
    %1521 = vdwg.mxu0
    %1522 = vmatprep.subr.mxu0 0.0
    %1523 = vmatpush1.msra.mxu0 %v50
    %1524 = vmatprep.subr.mxu0 0.0
    %1525 = vmatpush1.msra.mxu0 %v53
    %1526 = vmatprep.subr.mxu0 0.0
    %1527 = vmatpush1.msra.mxu0 %v56
    %1528 = vmatprep.subr.mxu0 0.0
    %1529 = vmatpush1.msra.mxu0 %v59
    %1530 = vmatprep.subr.mxu0 0.0
    %1531 = vmatpush1.msra.mxu0 0.0
    %1532 = vmatprep.subr.mxu0 0.0
    %1533 = vmatpush1.msra.mxu0 0.0
    %1534 = vmatprep.subr.mxu0 0.0
    %1535 = vmatpush1.msra.mxu0 0.0
    %1536 = vmatprep.subr.mxu0 0.0
    %1537 = vmatpush1.msra.mxu0 0.0
    %1538 = vmatprep.subr.mxu0 0.0
    %1539 = vmatpush1.msra.mxu0 0.0
    %1540 = vmatprep.subr.mxu0 0.0
    %1541 = vmatpush1.msra.mxu0 0.0
    %1542 = vmatprep.subr.mxu0 0.0
    %1543 = vmatpush1.msra.mxu0 0.0
    %1544 = vmatprep.subr.mxu0 0.0
    %1545 = vmatpush1.msra.mxu0 0.0
    %1546 = vmatprep.subr.mxu0 0.0
    %1547 = vmatpush1.msra.mxu0 0.0
    %1548 = vmatprep.subr.mxu0 0.0
    %1549 = vmatpush1.msra.mxu0 0.0
    %1550 = vmatprep.subr.mxu0 0.0
    %1551 = vmatpush1.msra.mxu0 0.0
    %1552 = vmatprep.subr.mxu0 0.0
    %1553 = vmatpush1.msra.mxu0 0.0
    %1554 = vmatprep.subr.mxu0 0.0
    %1555 = vmatpush1.msra.mxu0 0.0
    %1556 = vmatprep.subr.mxu0 0.0
    %1557 = vmatpush1.msra.mxu0 0.0
    %1558 = vmatprep.subr.mxu0 0.0
    %1559 = vmatpush1.msra.mxu0 0.0
    %1560 = vmatprep.subr.mxu0 0.0
    %1561 = vmatpush1.msra.mxu0 0.0
    %1562 = vmatprep.subr.mxu0 0.0
    %1563 = vmatpush1.msra.mxu0 0.0
    %1564 = vmatprep.subr.mxu0 0.0
    %1565 = vmatpush1.msra.mxu0 0.0
    %1566 = vmatprep.subr.mxu0 0.0
    %1567 = vmatpush1.msra.mxu0 0.0
    %1568 = vmatprep.subr.mxu0 0.0
    %1569 = vmatpush1.msra.mxu0 0.0
    %1570 = vmatprep.subr.mxu0 0.0
    %1571 = vmatpush1.msra.mxu0 0.0
    %1572 = vmatprep.subr.mxu0 0.0
    %1573 = vmatpush1.msra.mxu0 0.0
    %1574 = vmatprep.subr.mxu0 0.0
    %1575 = vmatpush1.msra.mxu0 0.0
    %1576 = vmatprep.subr.mxu0 0.0
    %1577 = vmatpush1.msra.mxu0 0.0
    %1578 = vmatprep.subr.mxu0 0.0
    %1579 = vmatpush1.msra.mxu0 0.0
    %1580 = vmatprep.subr.mxu0 0.0
    %1581 = vmatpush1.msra.mxu0 0.0
    %1582 = vmatprep.subr.mxu0 0.0
    %1583 = vmatpush1.msra.mxu0 0.0
    %1584 = vmatprep.subr.mxu0 0.0
    %1585 = vmatpush1.msra.mxu0 0.0
    %1586 = vmatprep.mubr.f32.mxu0 0.0
    %1587 = vmatmul.mubr.f32.gmra.mrb[0].mxu0 %v1449
    %v1588 = vpop.f32.mrb[0].mxu0
    %v1589 = vadd.f32 0.0, %v1588
    %v1590 = vpop.f32.mrb[0].mxu0
    %1591 = vdwg.mxu0
    %v1592 = vadd.f32 %v1520, %v64
    %v1595 = vunpack.c.l.s4 1966171168
    %v1596 = vunpack.c.0.s8 %v1595
    %v1597 = vlaneseq
    %v1598 = vshrl.u32 %v1597, 7
    %v1599 = vsub.s32 %v1596, %v1598
    %v1600 = vrot.slane %v1592, %v1599
    %v1601 = vcombine.high %v1600, %v1600
    %v1603 = vunpack.c.l.s4 1966171168
    %v1604 = vunpack.c.0.s8 %v1603
    %v1605 = vlaneseq
    %v1606 = vshrl.u32 %v1605, 7
    %v1607 = vsub.s32 %v1604, %v1606
    %v1608 = vrot.slane %v1600, %v1607
    %v1610 = vunpack.c.l.s4 1966171168
    %v1611 = vunpack.c.0.s8 %v1610
    %v1612 = vlaneseq
    %v1613 = vshrl.u32 %v1612, 7
    %v1614 = vsub.s32 %v1611, %v1613
    %v1615 = vrot.slane %v1601, %v1614
    %1618 = vst.msk [vmem:[%s4 + $0x4] sm:$0x1] %vm766, %v1608
    %1619 = vst.msk [vmem:[%s4 + $0xc] sm:$0x1] %vm766, %v1615
    %v1620 = vadd.f32 %v1589, %v65
    %s1621 = sld [smem:[#allocation2 + $0x4]]
    %p1622 = scmp.gt.s32.totalorder %s1621, 0
    %s1623 = scalar_select %p1622, 1, 0
    %v1624 = vstv %s1623
    %vm1625 = vcmp.eq.s32.totalorder %v1624, 1
    %v1627 = vrot.slane %v1620, 4
    %v1628 = vrot.slane %v1620, 5
    %v1631 = vsel %vm1625, %v155, %v1627
    %v1632 = vsel %vm1625, %v161, %v1628
    %v1634 = vrot.slane %v1518, 4
    %v1635 = vrot.slane %v1518, 5
    %v1638 = vadd.f32 %v1631, %v1634
    %v1639 = vadd.f32 %v1632, %v1635
    %v1640 = vtanh.pop %v1638
    %v1641 = vtanh.pop %v1639
    %v1644 = vrot.slane %v1640, 4
    %v1645 = vrot.slane %v1641, 3
    %v1646 = vsel %vm168, %v1645, %v1644
    %v1647 = vsel %vm170, %v1646, 0
    %1649 = vmatprep.subr.mxu0 %v49
    %1650 = vmatpush1.msra.mxu0 %v48
    %1651 = vmatprep.subr.mxu0 %v52
    %1652 = vmatpush1.msra.mxu0 %v51
    %1653 = vmatprep.subr.mxu0 %v55
    %1654 = vmatpush1.msra.mxu0 %v54
    %1655 = vmatprep.subr.mxu0 %v58
    %1656 = vmatpush1.msra.mxu0 %v57
    %1657 = vmatprep.subr.mxu0 0.0
    %1658 = vmatpush1.msra.mxu0 0.0
    %1659 = vmatprep.subr.mxu0 0.0
    %1660 = vmatpush1.msra.mxu0 0.0
    %1661 = vmatprep.subr.mxu0 0.0
    %1662 = vmatpush1.msra.mxu0 0.0
    %1663 = vmatprep.subr.mxu0 0.0
    %1664 = vmatpush1.msra.mxu0 0.0
    %1665 = vmatprep.subr.mxu0 0.0
    %1666 = vmatpush1.msra.mxu0 0.0
    %1667 = vmatprep.subr.mxu0 0.0
    %1668 = vmatpush1.msra.mxu0 0.0
    %1669 = vmatprep.subr.mxu0 0.0
    %1670 = vmatpush1.msra.mxu0 0.0
    %1671 = vmatprep.subr.mxu0 0.0
    %1672 = vmatpush1.msra.mxu0 0.0
    %1673 = vmatprep.subr.mxu0 0.0
    %1674 = vmatpush1.msra.mxu0 0.0
    %1675 = vmatprep.subr.mxu0 0.0
    %1676 = vmatpush1.msra.mxu0 0.0
    %1677 = vmatprep.subr.mxu0 0.0
    %1678 = vmatpush1.msra.mxu0 0.0
    %1679 = vmatprep.subr.mxu0 0.0
    %1680 = vmatpush1.msra.mxu0 0.0
    %1681 = vmatprep.subr.mxu0 0.0
    %1682 = vmatpush1.msra.mxu0 0.0
    %1683 = vmatprep.subr.mxu0 0.0
    %1684 = vmatpush1.msra.mxu0 0.0
    %1685 = vmatprep.subr.mxu0 0.0
    %1686 = vmatpush1.msra.mxu0 0.0
    %1687 = vmatprep.subr.mxu0 0.0
    %1688 = vmatpush1.msra.mxu0 0.0
    %1689 = vmatprep.subr.mxu0 0.0
    %1690 = vmatpush1.msra.mxu0 0.0
    %1691 = vmatprep.subr.mxu0 0.0
    %1692 = vmatpush1.msra.mxu0 0.0
    %1693 = vmatprep.subr.mxu0 0.0
    %1694 = vmatpush1.msra.mxu0 0.0
    %1695 = vmatprep.subr.mxu0 0.0
    %1696 = vmatpush1.msra.mxu0 0.0
    %1697 = vmatprep.subr.mxu0 0.0
    %1698 = vmatpush1.msra.mxu0 0.0
    %1699 = vmatprep.subr.mxu0 0.0
    %1700 = vmatpush1.msra.mxu0 0.0
    %1701 = vmatprep.subr.mxu0 0.0
    %1702 = vmatpush1.msra.mxu0 0.0
    %1703 = vmatprep.subr.mxu0 0.0
    %1704 = vmatpush1.msra.mxu0 0.0
    %1705 = vmatprep.subr.mxu0 0.0
    %1706 = vmatpush1.msra.mxu0 0.0
    %1707 = vmatprep.subr.mxu0 0.0
    %1708 = vmatpush1.msra.mxu0 0.0
    %1709 = vmatprep.subr.mxu0 0.0
    %1710 = vmatpush1.msra.mxu0 0.0
    %1711 = vmatprep.subr.mxu0 0.0
    %1712 = vmatpush1.msra.mxu0 0.0
    %1713 = vmatprep.mubr.f32.mxu0 0.0
    %1714 = vmatmul.mubr.f32.gmra.mrb[0].mxu0 %v1647
    %v1715 = vpop.f32.mrb[0].mxu0
    %v1716 = vadd.f32 0.0, %v1715
    %v1717 = vpop.f32.mrb[0].mxu0
    %v1718 = vadd.f32 0.0, %v1717
    %1719 = vdwg.mxu0
    %1720 = vmatprep.subr.mxu0 0.0
    %1721 = vmatpush1.msra.mxu0 %v50
    %1722 = vmatprep.subr.mxu0 0.0
    %1723 = vmatpush1.msra.mxu0 %v53
    %1724 = vmatprep.subr.mxu0 0.0
    %1725 = vmatpush1.msra.mxu0 %v56
    %1726 = vmatprep.subr.mxu0 0.0
    %1727 = vmatpush1.msra.mxu0 %v59
    %1728 = vmatprep.subr.mxu0 0.0
    %1729 = vmatpush1.msra.mxu0 0.0
    %1730 = vmatprep.subr.mxu0 0.0
    %1731 = vmatpush1.msra.mxu0 0.0
    %1732 = vmatprep.subr.mxu0 0.0
    %1733 = vmatpush1.msra.mxu0 0.0
    %1734 = vmatprep.subr.mxu0 0.0
    %1735 = vmatpush1.msra.mxu0 0.0
    %1736 = vmatprep.subr.mxu0 0.0
    %1737 = vmatpush1.msra.mxu0 0.0
    %1738 = vmatprep.subr.mxu0 0.0
    %1739 = vmatpush1.msra.mxu0 0.0
    %1740 = vmatprep.subr.mxu0 0.0
    %1741 = vmatpush1.msra.mxu0 0.0
    %1742 = vmatprep.subr.mxu0 0.0
    %1743 = vmatpush1.msra.mxu0 0.0
    %1744 = vmatprep.subr.mxu0 0.0
    %1745 = vmatpush1.msra.mxu0 0.0
    %1746 = vmatprep.subr.mxu0 0.0
    %1747 = vmatpush1.msra.mxu0 0.0
    %1748 = vmatprep.subr.mxu0 0.0
    %1749 = vmatpush1.msra.mxu0 0.0
    %1750 = vmatprep.subr.mxu0 0.0
    %1751 = vmatpush1.msra.mxu0 0.0
    %1752 = vmatprep.subr.mxu0 0.0
    %1753 = vmatpush1.msra.mxu0 0.0
    %1754 = vmatprep.subr.mxu0 0.0
    %1755 = vmatpush1.msra.mxu0 0.0
    %1756 = vmatprep.subr.mxu0 0.0
    %1757 = vmatpush1.msra.mxu0 0.0
    %1758 = vmatprep.subr.mxu0 0.0
    %1759 = vmatpush1.msra.mxu0 0.0
    %1760 = vmatprep.subr.mxu0 0.0
    %1761 = vmatpush1.msra.mxu0 0.0
    %1762 = vmatprep.subr.mxu0 0.0
    %1763 = vmatpush1.msra.mxu0 0.0
    %1764 = vmatprep.subr.mxu0 0.0
    %1765 = vmatpush1.msra.mxu0 0.0
    %1766 = vmatprep.subr.mxu0 0.0
    %1767 = vmatpush1.msra.mxu0 0.0
    %1768 = vmatprep.subr.mxu0 0.0
    %1769 = vmatpush1.msra.mxu0 0.0
    %1770 = vmatprep.subr.mxu0 0.0
    %1771 = vmatpush1.msra.mxu0 0.0
    %1772 = vmatprep.subr.mxu0 0.0
    %1773 = vmatpush1.msra.mxu0 0.0
    %1774 = vmatprep.subr.mxu0 0.0
    %1775 = vmatpush1.msra.mxu0 0.0
    %1776 = vmatprep.subr.mxu0 0.0
    %1777 = vmatpush1.msra.mxu0 0.0
    %1778 = vmatprep.subr.mxu0 0.0
    %1779 = vmatpush1.msra.mxu0 0.0
    %1780 = vmatprep.subr.mxu0 0.0
    %1781 = vmatpush1.msra.mxu0 0.0
    %1782 = vmatprep.subr.mxu0 0.0
    %1783 = vmatpush1.msra.mxu0 0.0
    %1784 = vmatprep.mubr.f32.mxu0 0.0
    %1785 = vmatmul.mubr.f32.gmra.mrb[0].mxu0 %v1647
    %v1786 = vpop.f32.mrb[0].mxu0
    %v1787 = vadd.f32 0.0, %v1786
    %v1788 = vpop.f32.mrb[0].mxu0
    %1789 = vdwg.mxu0
    %v1790 = vadd.f32 %v1718, %v64
    %v1793 = vunpack.c.l.s4 1966171168
    %v1794 = vunpack.c.0.s8 %v1793
    %v1795 = vlaneseq
    %v1796 = vshrl.u32 %v1795, 7
    %v1797 = vsub.s32 %v1794, %v1796
    %v1798 = vrot.slane %v1790, %v1797
    %v1799 = vcombine.high %v1798, %v1798
    %v1801 = vunpack.c.l.s4 1966171168
    %v1802 = vunpack.c.0.s8 %v1801
    %v1803 = vlaneseq
    %v1804 = vshrl.u32 %v1803, 7
    %v1805 = vsub.s32 %v1802, %v1804
    %v1806 = vrot.slane %v1798, %v1805
    %v1808 = vunpack.c.l.s4 1966171168
    %v1809 = vunpack.c.0.s8 %v1808
    %v1810 = vlaneseq
    %v1811 = vshrl.u32 %v1810, 7
    %v1812 = vsub.s32 %v1809, %v1811
    %v1813 = vrot.slane %v1799, %v1812
    %1816 = vst.msk [vmem:[%s4 + $0x5] sm:$0x1] %vm766, %v1806
    %1817 = vst.msk [vmem:[%s4 + $0xd] sm:$0x1] %vm766, %v1813
    %v1818 = vadd.f32 %v1787, %v65
    %s1819 = sld [smem:[#allocation2 + $0x5]]
    %p1820 = scmp.gt.s32.totalorder %s1819, 0
    %s1821 = scalar_select %p1820, 1, 0
    %v1822 = vstv %s1821
    %vm1823 = vcmp.eq.s32.totalorder %v1822, 1
    %v1825 = vrot.slane %v1818, 3
    %v1826 = vrot.slane %v1818, 4
    %v1829 = vsel %vm1823, %v155, %v1825
    %v1830 = vsel %vm1823, %v161, %v1826
    %v1832 = vrot.slane %v1716, 3
    %v1833 = vrot.slane %v1716, 4
    %v1836 = vadd.f32 %v1829, %v1832
    %v1837 = vadd.f32 %v1830, %v1833
    %v1838 = vtanh.pop %v1836
    %v1839 = vtanh.pop %v1837
    %v1842 = vrot.slane %v1838, 5
    %v1843 = vrot.slane %v1839, 4
    %v1844 = vsel %vm168, %v1843, %v1842
    %v1845 = vsel %vm170, %v1844, 0
    %1847 = vmatprep.subr.mxu0 %v49
    %1848 = vmatpush1.msra.mxu0 %v48
    %1849 = vmatprep.subr.mxu0 %v52
    %1850 = vmatpush1.msra.mxu0 %v51
    %1851 = vmatprep.subr.mxu0 %v55
    %1852 = vmatpush1.msra.mxu0 %v54
    %1853 = vmatprep.subr.mxu0 %v58
    %1854 = vmatpush1.msra.mxu0 %v57
    %1855 = vmatprep.subr.mxu0 0.0
    %1856 = vmatpush1.msra.mxu0 0.0
    %1857 = vmatprep.subr.mxu0 0.0
    %1858 = vmatpush1.msra.mxu0 0.0
    %1859 = vmatprep.subr.mxu0 0.0
    %1860 = vmatpush1.msra.mxu0 0.0
    %1861 = vmatprep.subr.mxu0 0.0
    %1862 = vmatpush1.msra.mxu0 0.0
    %1863 = vmatprep.subr.mxu0 0.0
    %1864 = vmatpush1.msra.mxu0 0.0
    %1865 = vmatprep.subr.mxu0 0.0
    %1866 = vmatpush1.msra.mxu0 0.0
    %1867 = vmatprep.subr.mxu0 0.0
    %1868 = vmatpush1.msra.mxu0 0.0
    %1869 = vmatprep.subr.mxu0 0.0
    %1870 = vmatpush1.msra.mxu0 0.0
    %1871 = vmatprep.subr.mxu0 0.0
    %1872 = vmatpush1.msra.mxu0 0.0
    %1873 = vmatprep.subr.mxu0 0.0
    %1874 = vmatpush1.msra.mxu0 0.0
    %1875 = vmatprep.subr.mxu0 0.0
    %1876 = vmatpush1.msra.mxu0 0.0
    %1877 = vmatprep.subr.mxu0 0.0
    %1878 = vmatpush1.msra.mxu0 0.0
    %1879 = vmatprep.subr.mxu0 0.0
    %1880 = vmatpush1.msra.mxu0 0.0
    %1881 = vmatprep.subr.mxu0 0.0
    %1882 = vmatpush1.msra.mxu0 0.0
    %1883 = vmatprep.subr.mxu0 0.0
    %1884 = vmatpush1.msra.mxu0 0.0
    %1885 = vmatprep.subr.mxu0 0.0
    %1886 = vmatpush1.msra.mxu0 0.0
    %1887 = vmatprep.subr.mxu0 0.0
    %1888 = vmatpush1.msra.mxu0 0.0
    %1889 = vmatprep.subr.mxu0 0.0
    %1890 = vmatpush1.msra.mxu0 0.0
    %1891 = vmatprep.subr.mxu0 0.0
    %1892 = vmatpush1.msra.mxu0 0.0
    %1893 = vmatprep.subr.mxu0 0.0
    %1894 = vmatpush1.msra.mxu0 0.0
    %1895 = vmatprep.subr.mxu0 0.0
    %1896 = vmatpush1.msra.mxu0 0.0
    %1897 = vmatprep.subr.mxu0 0.0
    %1898 = vmatpush1.msra.mxu0 0.0
    %1899 = vmatprep.subr.mxu0 0.0
    %1900 = vmatpush1.msra.mxu0 0.0
    %1901 = vmatprep.subr.mxu0 0.0
    %1902 = vmatpush1.msra.mxu0 0.0
    %1903 = vmatprep.subr.mxu0 0.0
    %1904 = vmatpush1.msra.mxu0 0.0
    %1905 = vmatprep.subr.mxu0 0.0
    %1906 = vmatpush1.msra.mxu0 0.0
    %1907 = vmatprep.subr.mxu0 0.0
    %1908 = vmatpush1.msra.mxu0 0.0
    %1909 = vmatprep.subr.mxu0 0.0
    %1910 = vmatpush1.msra.mxu0 0.0
    %1911 = vmatprep.mubr.f32.mxu0 0.0
    %1912 = vmatmul.mubr.f32.gmra.mrb[0].mxu0 %v1845
    %v1913 = vpop.f32.mrb[0].mxu0
    %v1914 = vadd.f32 0.0, %v1913
    %v1915 = vpop.f32.mrb[0].mxu0
    %v1916 = vadd.f32 0.0, %v1915
    %1917 = vdwg.mxu0
    %1918 = vmatprep.subr.mxu0 0.0
    %1919 = vmatpush1.msra.mxu0 %v50
    %1920 = vmatprep.subr.mxu0 0.0
    %1921 = vmatpush1.msra.mxu0 %v53
    %1922 = vmatprep.subr.mxu0 0.0
    %1923 = vmatpush1.msra.mxu0 %v56
    %1924 = vmatprep.subr.mxu0 0.0
    %1925 = vmatpush1.msra.mxu0 %v59
    %1926 = vmatprep.subr.mxu0 0.0
    %1927 = vmatpush1.msra.mxu0 0.0
    %1928 = vmatprep.subr.mxu0 0.0
    %1929 = vmatpush1.msra.mxu0 0.0
    %1930 = vmatprep.subr.mxu0 0.0
    %1931 = vmatpush1.msra.mxu0 0.0
    %1932 = vmatprep.subr.mxu0 0.0
    %1933 = vmatpush1.msra.mxu0 0.0
    %1934 = vmatprep.subr.mxu0 0.0
    %1935 = vmatpush1.msra.mxu0 0.0
    %1936 = vmatprep.subr.mxu0 0.0
    %1937 = vmatpush1.msra.mxu0 0.0
    %1938 = vmatprep.subr.mxu0 0.0
    %1939 = vmatpush1.msra.mxu0 0.0
    %1940 = vmatprep.subr.mxu0 0.0
    %1941 = vmatpush1.msra.mxu0 0.0
    %1942 = vmatprep.subr.mxu0 0.0
    %1943 = vmatpush1.msra.mxu0 0.0
    %1944 = vmatprep.subr.mxu0 0.0
    %1945 = vmatpush1.msra.mxu0 0.0
    %1946 = vmatprep.subr.mxu0 0.0
    %1947 = vmatpush1.msra.mxu0 0.0
    %1948 = vmatprep.subr.mxu0 0.0
    %1949 = vmatpush1.msra.mxu0 0.0
    %1950 = vmatprep.subr.mxu0 0.0
    %1951 = vmatpush1.msra.mxu0 0.0
    %1952 = vmatprep.subr.mxu0 0.0
    %1953 = vmatpush1.msra.mxu0 0.0
    %1954 = vmatprep.subr.mxu0 0.0
    %1955 = vmatpush1.msra.mxu0 0.0
    %1956 = vmatprep.subr.mxu0 0.0
    %1957 = vmatpush1.msra.mxu0 0.0
    %1958 = vmatprep.subr.mxu0 0.0
    %1959 = vmatpush1.msra.mxu0 0.0
    %1960 = vmatprep.subr.mxu0 0.0
    %1961 = vmatpush1.msra.mxu0 0.0
    %1962 = vmatprep.subr.mxu0 0.0
    %1963 = vmatpush1.msra.mxu0 0.0
    %1964 = vmatprep.subr.mxu0 0.0
    %1965 = vmatpush1.msra.mxu0 0.0
    %1966 = vmatprep.subr.mxu0 0.0
    %1967 = vmatpush1.msra.mxu0 0.0
    %1968 = vmatprep.subr.mxu0 0.0
    %1969 = vmatpush1.msra.mxu0 0.0
    %1970 = vmatprep.subr.mxu0 0.0
    %1971 = vmatpush1.msra.mxu0 0.0
    %1972 = vmatprep.subr.mxu0 0.0
    %1973 = vmatpush1.msra.mxu0 0.0
    %1974 = vmatprep.subr.mxu0 0.0
    %1975 = vmatpush1.msra.mxu0 0.0
    %1976 = vmatprep.subr.mxu0 0.0
    %1977 = vmatpush1.msra.mxu0 0.0
    %1978 = vmatprep.subr.mxu0 0.0
    %1979 = vmatpush1.msra.mxu0 0.0
    %1980 = vmatprep.subr.mxu0 0.0
    %1981 = vmatpush1.msra.mxu0 0.0
    %1982 = vmatprep.mubr.f32.mxu0 0.0
    %1983 = vmatmul.mubr.f32.gmra.mrb[0].mxu0 %v1845
    %v1984 = vpop.f32.mrb[0].mxu0
    %v1985 = vadd.f32 0.0, %v1984
    %v1986 = vpop.f32.mrb[0].mxu0
    %1987 = vdwg.mxu0
    %v1988 = vadd.f32 %v1916, %v64
    %v1991 = vunpack.c.l.s4 1966171168
    %v1992 = vunpack.c.0.s8 %v1991
    %v1993 = vlaneseq
    %v1994 = vshrl.u32 %v1993, 7
    %v1995 = vsub.s32 %v1992, %v1994
    %v1996 = vrot.slane %v1988, %v1995
    %v1997 = vcombine.high %v1996, %v1996
    %v1999 = vunpack.c.l.s4 1966171168
    %v2000 = vunpack.c.0.s8 %v1999
    %v2001 = vlaneseq
    %v2002 = vshrl.u32 %v2001, 7
    %v2003 = vsub.s32 %v2000, %v2002
    %v2004 = vrot.slane %v1996, %v2003
    %v2006 = vunpack.c.l.s4 1966171168
    %v2007 = vunpack.c.0.s8 %v2006
    %v2008 = vlaneseq
    %v2009 = vshrl.u32 %v2008, 7
    %v2010 = vsub.s32 %v2007, %v2009
    %v2011 = vrot.slane %v1997, %v2010
    %2014 = vst.msk [vmem:[%s4 + $0x6] sm:$0x1] %vm766, %v2004
    %2015 = vst.msk [vmem:[%s4 + $0xe] sm:$0x1] %vm766, %v2011
    %v2016 = vadd.f32 %v1985, %v65
    %s2017 = sld [smem:[#allocation2 + $0x6]]
    %p2018 = scmp.gt.s32.totalorder %s2017, 0
    %s2019 = scalar_select %p2018, 1, 0
    %v2020 = vstv %s2019
    %vm2021 = vcmp.eq.s32.totalorder %v2020, 1
    %v2023 = vrot.slane %v2016, 2
    %v2024 = vrot.slane %v2016, 3
    %v2027 = vsel %vm2021, %v155, %v2023
    %v2028 = vsel %vm2021, %v161, %v2024
    %v2030 = vrot.slane %v1914, 2
    %v2031 = vrot.slane %v1914, 3
    %v2034 = vadd.f32 %v2027, %v2030
    %v2035 = vadd.f32 %v2028, %v2031
    %v2036 = vtanh.pop %v2034
    %v2037 = vtanh.pop %v2035
    %v2040 = vrot.slane %v2036, 6
    %v2041 = vrot.slane %v2037, 5
    %v2042 = vsel %vm168, %v2041, %v2040
    %v2043 = vsel %vm170, %v2042, 0
    %2045 = vmatprep.subr.mxu0 %v49
    %2046 = vmatpush1.msra.mxu0 %v48
    %2047 = vmatprep.subr.mxu0 %v52
    %2048 = vmatpush1.msra.mxu0 %v51
    %2049 = vmatprep.subr.mxu0 %v55
    %2050 = vmatpush1.msra.mxu0 %v54
    %2051 = vmatprep.subr.mxu0 %v58
    %2052 = vmatpush1.msra.mxu0 %v57
    %2053 = vmatprep.subr.mxu0 0.0
    %2054 = vmatpush1.msra.mxu0 0.0
    %2055 = vmatprep.subr.mxu0 0.0
    %2056 = vmatpush1.msra.mxu0 0.0
    %2057 = vmatprep.subr.mxu0 0.0
    %2058 = vmatpush1.msra.mxu0 0.0
    %2059 = vmatprep.subr.mxu0 0.0
    %2060 = vmatpush1.msra.mxu0 0.0
    %2061 = vmatprep.subr.mxu0 0.0
    %2062 = vmatpush1.msra.mxu0 0.0
    %2063 = vmatprep.subr.mxu0 0.0
    %2064 = vmatpush1.msra.mxu0 0.0
    %2065 = vmatprep.subr.mxu0 0.0
    %2066 = vmatpush1.msra.mxu0 0.0
    %2067 = vmatprep.subr.mxu0 0.0
    %2068 = vmatpush1.msra.mxu0 0.0
    %2069 = vmatprep.subr.mxu0 0.0
    %2070 = vmatpush1.msra.mxu0 0.0
    %2071 = vmatprep.subr.mxu0 0.0
    %2072 = vmatpush1.msra.mxu0 0.0
    %2073 = vmatprep.subr.mxu0 0.0
    %2074 = vmatpush1.msra.mxu0 0.0
    %2075 = vmatprep.subr.mxu0 0.0
    %2076 = vmatpush1.msra.mxu0 0.0
    %2077 = vmatprep.subr.mxu0 0.0
    %2078 = vmatpush1.msra.mxu0 0.0
    %2079 = vmatprep.subr.mxu0 0.0
    %2080 = vmatpush1.msra.mxu0 0.0
    %2081 = vmatprep.subr.mxu0 0.0
    %2082 = vmatpush1.msra.mxu0 0.0
    %2083 = vmatprep.subr.mxu0 0.0
    %2084 = vmatpush1.msra.mxu0 0.0
    %2085 = vmatprep.subr.mxu0 0.0
    %2086 = vmatpush1.msra.mxu0 0.0
    %2087 = vmatprep.subr.mxu0 0.0
    %2088 = vmatpush1.msra.mxu0 0.0
    %2089 = vmatprep.subr.mxu0 0.0
    %2090 = vmatpush1.msra.mxu0 0.0
    %2091 = vmatprep.subr.mxu0 0.0
    %2092 = vmatpush1.msra.mxu0 0.0
    %2093 = vmatprep.subr.mxu0 0.0
    %2094 = vmatpush1.msra.mxu0 0.0
    %2095 = vmatprep.subr.mxu0 0.0
    %2096 = vmatpush1.msra.mxu0 0.0
    %2097 = vmatprep.subr.mxu0 0.0
    %2098 = vmatpush1.msra.mxu0 0.0
    %2099 = vmatprep.subr.mxu0 0.0
    %2100 = vmatpush1.msra.mxu0 0.0
    %2101 = vmatprep.subr.mxu0 0.0
    %2102 = vmatpush1.msra.mxu0 0.0
    %2103 = vmatprep.subr.mxu0 0.0
    %2104 = vmatpush1.msra.mxu0 0.0
    %2105 = vmatprep.subr.mxu0 0.0
    %2106 = vmatpush1.msra.mxu0 0.0
    %2107 = vmatprep.subr.mxu0 0.0
    %2108 = vmatpush1.msra.mxu0 0.0
    %2109 = vmatprep.mubr.f32.mxu0 0.0
    %2110 = vmatmul.mubr.f32.gmra.mrb[0].mxu0 %v2043
    %v2111 = vpop.f32.mrb[0].mxu0
    %v2112 = vpop.f32.mrb[0].mxu0
    %v2113 = vadd.f32 0.0, %v2112
    %2114 = vdwg.mxu0
    %v2115 = vadd.f32 %v2113, %v64
    %v2118 = vunpack.c.l.s4 1966171168
    %v2119 = vunpack.c.0.s8 %v2118
    %v2120 = vlaneseq
    %v2121 = vshrl.u32 %v2120, 7
    %v2122 = vsub.s32 %v2119, %v2121
    %v2123 = vrot.slane %v2115, %v2122
    %v2124 = vcombine.high %v2123, %v2123
    %v2126 = vunpack.c.l.s4 1966171168
    %v2127 = vunpack.c.0.s8 %v2126
    %v2128 = vlaneseq
    %v2129 = vshrl.u32 %v2128, 7
    %v2130 = vsub.s32 %v2127, %v2129
    %v2131 = vrot.slane %v2123, %v2130
    %v2133 = vunpack.c.l.s4 1966171168
    %v2134 = vunpack.c.0.s8 %v2133
    %v2135 = vlaneseq
    %v2136 = vshrl.u32 %v2135, 7
    %v2137 = vsub.s32 %v2134, %v2136
    %v2138 = vrot.slane %v2124, %v2137
    %2141 = vst.msk [vmem:[%s4 + $0x7] sm:$0x1] %vm766, %v2131
    %2142 = vst.msk [vmem:[%s4 + $0xf] sm:$0x1] %vm766, %v2138
    // Predicated region
    $region26: #{_seq2seq_jit.1} parent=1 // pred_check
      _
    $region27: #{_seq2seq_jit.1} parent=1 // pred_check_branch
      %2144 = sbr.rel (0) target = $region29
    $region28: #{_seq2seq_jit.1} parent=1 // pred_region
      _
    $region29: #{_seq2seq_jit.1} parent=1 // pred_fallthru
      _
    // Predicated region
    $region30: #{_seq2seq_jit.1} parent=1 // pred_check
      _
    $region31: #{_seq2seq_jit.1} parent=1 // pred_check_branch
      %2146 = sbr.rel (0) target = $region33
    $region32: #{_seq2seq_jit.1} parent=1 // pred_region
      _
    $region33: #{_seq2seq_jit.1} parent=1 // pred_fallthru
      _
    %2147 = vsyncpa [#allocation3], 1
    %2148 = vsyncpa [#allocation4], 1

</llo_original>
